<compile_context>
chip_gen: v7x
topology: tpu7x:2x2x1
jax: 0.10.0
libtpu: 0.0.40
codegen_flags: <defaults>
</compile_context>

<pallas_src>
import functools
import math

import jax
import jax.numpy as jnp
from jax.experimental import pallas as pl
from jax.experimental.pallas import tpu as pltpu


def _layer_norm_f32(x, gamma, beta, eps=1e-5):
    mu = jnp.mean(x, axis=-1, keepdims=True)
    xc = x - mu
    var = jnp.mean(xc * xc, axis=-1, keepdims=True)
    return xc * jax.lax.rsqrt(var + eps) * gamma + beta


def resblock_kernel(*refs, n_head, has_mask):
    if has_mask:
        (x_ref, mask_ref,
         ln1_g_ref, ln1_b_ref, w_qkv_ref, b_qkv_ref, w_out_ref, b_out_ref,
         ln2_g_ref, ln2_b_ref, w_fc_ref, b_fc_ref, w_proj_ref, b_proj_ref,
         o_ref) = refs
    else:
        mask_ref = None
        (x_ref,
         ln1_g_ref, ln1_b_ref, w_qkv_ref, b_qkv_ref, w_out_ref, b_out_ref,
         ln2_g_ref, ln2_b_ref, w_fc_ref, b_fc_ref, w_proj_ref, b_proj_ref,
         o_ref) = refs

    B, L, E = x_ref.shape
    H = n_head
    dh = E // H
    M = B * L
    scale = 1.0 / math.sqrt(dh)

    # Pack batch * seq into the GEMM row dimension (fills the MXU).
    x = x_ref[...].reshape(M, E)                              # (M, E) f32

    # ---------------- attention branch ----------------
    xn = _layer_norm_f32(x, ln1_g_ref[...], ln1_b_ref[...])
    qkv = jnp.dot(xn.astype(jnp.bfloat16), w_qkv_ref[...],
                  preferred_element_type=jnp.float32) + b_qkv_ref[...]   # (M, 3E)

    def split_heads(base):
        # columns [base : base+E] of qkv, regrouped to (H*B, L, dh) in bf16.
        heads = [qkv[:, base + h * dh: base + (h + 1) * dh].astype(jnp.bfloat16)
                 for h in range(H)]
        stacked = jnp.stack(heads, axis=0)                    # (H, M, dh)
        return stacked.reshape(H * B, L, dh)                  # last dim preserved

    q = split_heads(0)
    k = split_heads(E)
    v = split_heads(2 * E)

    # One batched contraction over all (head, batch) pairs.
    s = jnp.einsum("gqd,gkd->gqk", q, k,
                   preferred_element_type=jnp.float32) * scale           # (G, L, L)
    if has_mask:
        s = s + mask_ref[...][None, :, :]                     # mask added once for all heads
    m = jnp.max(s, axis=-1, keepdims=True)
    m = jnp.maximum(m, -1e30)                                 # guard fully-masked rows
    p = jnp.exp(s - m)
    denom = jnp.sum(p, axis=-1, keepdims=True)
    p = p / jnp.maximum(denom, 1e-30)                         # exact division (parity)

    o = jnp.einsum("gqk,gkd->gqd", p.astype(jnp.bfloat16), v,
                   preferred_element_type=jnp.float32)        # (G, L, dh)
    o = o.reshape(H, M, dh)
    attn = jnp.concatenate([o[h] for h in range(H)], axis=-1)  # (M, E), head-major cols
    attn = jnp.dot(attn.astype(jnp.bfloat16), w_out_ref[...],
                   preferred_element_type=jnp.float32) + b_out_ref[...]
    x = x + attn

    # ---------------- MLP branch ----------------
    xn2 = _layer_norm_f32(x, ln2_g_ref[...], ln2_b_ref[...])
    h1 = jnp.dot(xn2.astype(jnp.bfloat16), w_fc_ref[...],
                 preferred_element_type=jnp.float32) + b_fc_ref[...]     # (M, 4E)
    h1 = h1 * jax.nn.sigmoid(1.702 * h1)                                 # QuickGELU
    mlp = jnp.dot(h1.astype(jnp.bfloat16), w_proj_ref[...],
                  preferred_element_type=jnp.float32) + b_proj_ref[...]  # (M, E)

    o_ref[...] = (x + mlp).reshape(B, L, E).astype(o_ref.dtype)


def _vmem_limit_bytes(resident_bytes):
    """Generation-aware VMEM budget: ~75% of physical (v5e/v6e ~96 MiB, v7x ~48 MiB)."""
    try:
        cap = int(getattr(pltpu.get_tpu_info(), "vmem_capacity_bytes", 0) or 0)
    except Exception:
        cap = 0
    if cap <= 0:
        cap = 64 << 20                       # unknown chip: assume v7x-class 64 MiB
    limit = min((cap * 3) // 4, 100 << 20)
    # make sure the resident (single-buffered) weights always fit with headroom
    limit = max(limit, min(resident_bytes + (24 << 20), cap - (4 << 20)))
    return int(limit)


def _pick_b_tile(N, L, E, n_head, vmem_limit, resident_bytes):
    """Largest divisor of N whose activations fit; stop once B_TILE*L >= 256 rows."""
    per_elem = 4 * L * (3 * E + 4 * E + 4 * E + n_head * L)   # rough f32 scratch / element
    budget = max((vmem_limit - resident_bytes) // 2, 4 << 20)
    bt = 1
    for cand in range(1, N + 1):
        if N % cand:
            continue
        if cand * per_elem > budget:
            break
        bt = cand
        if cand * L >= 256:                  # enough rows to fill the MXU
            break
    return bt


def _res_block(x, mask, layer, n_head, b_tile, vmem_limit):
    """x: (N, L, E) f32; mask: (L, L) f32 or None; layer: tuple of 12 params."""
    N, L, E = x.shape
    has_mask = mask is not None

    # Whole-array VMEM operands: loaded once, single-buffered (no pipelining).
    resident = pl.BlockSpec(memory_space=pltpu.MemorySpace.VMEM)

    in_specs = [pl.BlockSpec((b_tile, L, E), lambda b: (b, 0, 0))]
    operands = [x]
    if has_mask:
        in_specs.append(resident)
        operands.append(mask)
    in_specs += [resident] * 12
    operands += list(layer)

    out_spec = pl.BlockSpec((b_tile, L, E), lambda b: (b, 0, 0))

    # Advisory cost estimate (helps XLA schedule around the kernel).
    flops = 24 * N * L * E * E + 4 * N * L * L * E
    transcendentals = N * (n_head * L * L + L * 4 * E)
    w_bytes = sum(int(p.size) * p.dtype.itemsize for p in layer)
    bytes_accessed = 2 * N * L * E * 4 + w_bytes + (int(mask.size) * 4 if has_mask else 0)

    kernel = functools.partial(resblock_kernel, n_head=n_head, has_mask=has_mask)
    return pl.pallas_call(
        kernel,
        out_shape=jax.ShapeDtypeStruct((N, L, E), jnp.float32),
        grid=(N // b_tile,),
        in_specs=in_specs,
        out_specs=out_spec,
        compiler_params=pltpu.CompilerParams(
            dimension_semantics=("parallel",),
            vmem_limit_bytes=vmem_limit,
        ),
        cost_estimate=pl.CostEstimate(
            flops=int(flops),
            transcendentals=int(transcendentals),
            bytes_accessed=int(bytes_accessed),
        ),
    )(*operands)


def transformer_forward(x_lnd, layer_params, n_head, attn_mask=None):
    """x_lnd: (L, N, E) f32 — same (seq, batch, width) layout as the PyTorch module."""
    L, N, E = x_lnd.shape
    assert E % n_head == 0
    mask = None if attn_mask is None else attn_mask.astype(jnp.float32)

    x = jnp.transpose(x_lnd, (1, 0, 2))                        # (N, L, E)

    resident_bytes = sum(int(p.size) * p.dtype.itemsize for p in layer_params[0])
    if mask is not None:
        resident_bytes += int(mask.size) * 4
    vmem_limit = _vmem_limit_bytes(resident_bytes)
    b_tile = _pick_b_tile(N, L, E, n_head, vmem_limit, resident_bytes)

    for layer in layer_params:
        x = _res_block(x, mask, layer, n_head, b_tile, vmem_limit)
    return jnp.transpose(x, (1, 0, 2))                         # back to (L, N, E)


def init_params(key, width, layers):
    """Deterministic init; weights stored in bf16 (f32 accumulation in-kernel)."""
    E = width

    def unif(k, shape, fan_in):
        bound = 1.0 / math.sqrt(fan_in)
        return jax.random.uniform(k, shape, jnp.float32, -bound, bound)

    params = []
    for lk in jax.random.split(key, layers):
        ks = jax.random.split(lk, 4)
        w_qkv = unif(ks[0], (E, 3 * E), E)          # in_proj_weight.T
        w_out = unif(ks[1], (E, E), E)              # out_proj.weight.T
        w_fc = unif(ks[2], (E, 4 * E), E)           # c_fc.weight.T
        w_proj = unif(ks[3], (4 * E, E), 4 * E)     # c_proj.weight.T
        params.append((
            jnp.ones((1, E), jnp.float32), jnp.zeros((1, E), jnp.float32),   # ln_1
            w_qkv.astype(jnp.bfloat16), jnp.zeros((1, 3 * E), jnp.float32),
            w_out.astype(jnp.bfloat16), jnp.zeros((1, E), jnp.float32),
            jnp.ones((1, E), jnp.float32), jnp.zeros((1, E), jnp.float32),   # ln_2
            w_fc.astype(jnp.bfloat16), jnp.zeros((1, 4 * E), jnp.float32),
            w_proj.astype(jnp.bfloat16), jnp.zeros((1, E), jnp.float32),
        ))
    return params


def _reference_forward(x_lnd, layer_params, n_head, attn_mask=None):
    """Pure-JAX reference mirroring the kernel's precision (bf16 matmul inputs, f32 acc)."""
    x = jnp.transpose(x_lnd, (1, 0, 2)).astype(jnp.float32)    # (N, L, E)
    N, L, E = x.shape
    dh = E // n_head
    for (g1, b1, wqkv, bqkv, wout, bout, g2, b2, wfc, bfc, wpj, bpj) in layer_params:
        xn = _layer_norm_f32(x, g1, b1)
        qkv = jnp.einsum("nle,ef->nlf", xn.astype(jnp.bfloat16), wqkv,
                         preferred_element_type=jnp.float32) + bqkv
        q = qkv[..., :E].reshape(N, L, n_head, dh)
        k = qkv[..., E:2 * E].reshape(N, L, n_head, dh)
        v = qkv[..., 2 * E:].reshape(N, L, n_head, dh)
        s = jnp.einsum("nqhd,nkhd->nhqk", q.astype(jnp.bfloat16), k.astype(jnp.bfloat16),
                       preferred_element_type=jnp.float32) / math.sqrt(dh)
        if attn_mask is not None:
            s = s + attn_mask.astype(jnp.float32)
        p = jax.nn.softmax(s, axis=-1)
        o = jnp.einsum("nhqk,nkhd->nqhd", p.astype(jnp.bfloat16), v.astype(jnp.bfloat16),
                       preferred_element_type=jnp.float32).reshape(N, L, E)
        o = jnp.einsum("nle,ef->nlf", o.astype(jnp.bfloat16), wout,
                       preferred_element_type=jnp.float32) + bout
        x = x + o
        xn2 = _layer_norm_f32(x, g2, b2)
        h = jnp.einsum("nle,ef->nlf", xn2.astype(jnp.bfloat16), wfc,
                       preferred_element_type=jnp.float32) + bfc
        h = h * jax.nn.sigmoid(1.702 * h)
        mlpo = jnp.einsum("nlf,fe->nle", h.astype(jnp.bfloat16), wpj,
                          preferred_element_type=jnp.float32) + bpj
        x = x + mlpo
    return jnp.transpose(x, (1, 0, 2))


if __name__ == "__main__":
    key = jax.random.PRNGKey(0)
    k_x, k_p = jax.random.split(key)

    width, layers, heads = 128, 2, 4      # small Transformer(width=128, layers=2, heads=4)
    seq_len, batch = 8, 2

    x = jax.random.normal(k_x, (seq_len, batch, width), dtype=jnp.float32)
    params = init_params(k_p, width, layers)

    out = transformer_forward(x, params, heads, attn_mask=None)
    out = jax.block_until_ready(out)

    assert out.shape == (seq_len, batch, width)
    assert bool(jnp.all(jnp.isfinite(out)))

    ref = jax.block_until_ready(_reference_forward(x, params, heads, attn_mask=None))
    assert bool(jnp.allclose(out, ref, atol=2e-2, rtol=2e-2)), \
        f"max abs diff {float(jnp.max(jnp.abs(out - ref)))}"

    print("KERNEL_OK")
</pallas_src>

<mosaic_0001>
module attributes {stable_mosaic.version = 11 : i64} {
  func.func @resblock_kernel(%arg0: i32, %arg1: memref<2x8x128xf32, #tpu.memory_space<vmem>>, %arg2: memref<1x128xf32, #tpu.memory_space<vmem>>, %arg3: memref<1x128xf32, #tpu.memory_space<vmem>>, %arg4: memref<128x384xbf16, #tpu.memory_space<vmem>>, %arg5: memref<1x384xf32, #tpu.memory_space<vmem>>, %arg6: memref<128x128xbf16, #tpu.memory_space<vmem>>, %arg7: memref<1x128xf32, #tpu.memory_space<vmem>>, %arg8: memref<1x128xf32, #tpu.memory_space<vmem>>, %arg9: memref<1x128xf32, #tpu.memory_space<vmem>>, %arg10: memref<128x512xbf16, #tpu.memory_space<vmem>>, %arg11: memref<1x512xf32, #tpu.memory_space<vmem>>, %arg12: memref<512x128xbf16, #tpu.memory_space<vmem>>, %arg13: memref<1x128xf32, #tpu.memory_space<vmem>>, %arg14: memref<2x8x128xf32, #tpu.memory_space<vmem>>) attributes {dimension_semantics = [#tpu.dimension_semantics<parallel>], iteration_bounds = array<i64: 1>, scalar_prefetch = 0 : i64, scratch_operands = 0 : i64, tpu.core_type = #tpu.core_type<tc>, window_params = [{transform_indices = @transform_0, window_bounds = array<i64: 2, 8, 128>}, {pipeline_mode = #tpu.pipeline_mode<synchronous>, transform_indices = @transform_1, window_bounds = array<i64: 1, 128>}, {pipeline_mode = #tpu.pipeline_mode<synchronous>, transform_indices = @transform_2, window_bounds = array<i64: 1, 128>}, {pipeline_mode = #tpu.pipeline_mode<synchronous>, transform_indices = @transform_3, window_bounds = array<i64: 128, 384>}, {pipeline_mode = #tpu.pipeline_mode<synchronous>, transform_indices = @transform_4, window_bounds = array<i64: 1, 384>}, {pipeline_mode = #tpu.pipeline_mode<synchronous>, transform_indices = @transform_5, window_bounds = array<i64: 128, 128>}, {pipeline_mode = #tpu.pipeline_mode<synchronous>, transform_indices = @transform_6, window_bounds = array<i64: 1, 128>}, {pipeline_mode = #tpu.pipeline_mode<synchronous>, transform_indices = @transform_7, window_bounds = array<i64: 1, 128>}, {pipeline_mode = #tpu.pipeline_mode<synchronous>, transform_indices = @transform_8, window_bounds = array<i64: 1, 128>}, {pipeline_mode = #tpu.pipeline_mode<synchronous>, transform_indices = @transform_9, window_bounds = array<i64: 128, 512>}, {pipeline_mode = #tpu.pipeline_mode<synchronous>, transform_indices = @transform_10, window_bounds = array<i64: 1, 512>}, {pipeline_mode = #tpu.pipeline_mode<synchronous>, transform_indices = @transform_11, window_bounds = array<i64: 512, 128>}, {pipeline_mode = #tpu.pipeline_mode<synchronous>, transform_indices = @transform_12, window_bounds = array<i64: 1, 128>}, {transform_indices = @transform_13, window_bounds = array<i64: 2, 8, 128>}]} {
    %c0 = arith.constant 0 : index
    %c0_0 = arith.constant 0 : index
    %c0_1 = arith.constant 0 : index
    %0 = vector.load %arg1[%c0, %c0_0, %c0_1] : memref<2x8x128xf32, #tpu.memory_space<vmem>>, vector<2x8x128xf32>
    %1 = vector.shape_cast %0 : vector<2x8x128xf32> to vector<16x128xf32>
    %c0_2 = arith.constant 0 : index
    %c0_3 = arith.constant 0 : index
    %2 = vector.load %arg2[%c0_2, %c0_3] : memref<1x128xf32, #tpu.memory_space<vmem>>, vector<1x128xf32>
    %c0_4 = arith.constant 0 : index
    %c0_5 = arith.constant 0 : index
    %3 = vector.load %arg3[%c0_4, %c0_5] : memref<1x128xf32, #tpu.memory_space<vmem>>, vector<1x128xf32>
    %cst = arith.constant dense<0.000000e+00> : vector<16xf32>
    %4 = vector.multi_reduction <add>, %1, %cst [1] : vector<16x128xf32> to vector<16xf32>
    %5 = vector.shape_cast %4 : vector<16xf32> to vector<16x1xf32>
    %cst_6 = arith.constant 1.280000e+02 : f32
    %6 = vector.broadcast %cst_6 : f32 to vector<16x1xf32>
    %7 = arith.divf %5, %6 : vector<16x1xf32>
    %8 = vector.broadcast %7 : vector<16x1xf32> to vector<16x128xf32>
    %9 = arith.subf %1, %8 : vector<16x128xf32>
    %10 = arith.mulf %9, %9 : vector<16x128xf32>
    %cst_7 = arith.constant dense<0.000000e+00> : vector<16xf32>
    %11 = vector.multi_reduction <add>, %10, %cst_7 [1] : vector<16x128xf32> to vector<16xf32>
    %12 = vector.shape_cast %11 : vector<16xf32> to vector<16x1xf32>
    %cst_8 = arith.constant 1.280000e+02 : f32
    %13 = vector.broadcast %cst_8 : f32 to vector<16x1xf32>
    %14 = arith.divf %12, %13 : vector<16x1xf32>
    %cst_9 = arith.constant 9.99999974E-6 : f32
    %15 = vector.broadcast %cst_9 : f32 to vector<16x1xf32>
    %16 = arith.addf %14, %15 : vector<16x1xf32>
    %17 = math.rsqrt %16 : vector<16x1xf32>
    %18 = vector.broadcast %17 : vector<16x1xf32> to vector<16x128xf32>
    %19 = arith.mulf %9, %18 : vector<16x128xf32>
    %20 = vector.broadcast %2 : vector<1x128xf32> to vector<16x128xf32>
    %21 = arith.mulf %19, %20 : vector<16x128xf32>
    %22 = vector.broadcast %3 : vector<1x128xf32> to vector<16x128xf32>
    %23 = arith.addf %21, %22 : vector<16x128xf32>
    %24 = arith.truncf %23 : vector<16x128xf32> to vector<16x128xbf16>
    %c0_10 = arith.constant 0 : index
    %c0_11 = arith.constant 0 : index
    %25 = vector.load %arg4[%c0_10, %c0_11] : memref<128x384xbf16, #tpu.memory_space<vmem>>, vector<128x384xbf16>
    %cst_12 = arith.constant dense<0.000000e+00> : vector<16x384xf32>
    %26 = tpu.matmul %24, %25, %cst_12 {dimension_numbers = #tpu.dot_dimension_numbers<[1], [0], [0], [1], [0, 0, 1, 1], [], []>} : vector<16x128xbf16>, vector<128x384xbf16>, vector<16x384xf32> -> vector<16x384xf32>
    %c0_13 = arith.constant 0 : index
    %c0_14 = arith.constant 0 : index
    %27 = vector.load %arg5[%c0_13, %c0_14] : memref<1x384xf32, #tpu.memory_space<vmem>>, vector<1x384xf32>
    %28 = vector.broadcast %27 : vector<1x384xf32> to vector<16x384xf32>
    %29 = arith.addf %26, %28 : vector<16x384xf32>
    %30 = vector.extract_strided_slice %29 {offsets = [0, 0], sizes = [16, 32], strides = [1, 1]} : vector<16x384xf32> to vector<16x32xf32>
    %31 = arith.truncf %30 : vector<16x32xf32> to vector<16x32xbf16>
    %32 = vector.extract_strided_slice %29 {offsets = [0, 32], sizes = [16, 32], strides = [1, 1]} : vector<16x384xf32> to vector<16x32xf32>
    %33 = arith.truncf %32 : vector<16x32xf32> to vector<16x32xbf16>
    %34 = vector.extract_strided_slice %29 {offsets = [0, 64], sizes = [16, 32], strides = [1, 1]} : vector<16x384xf32> to vector<16x32xf32>
    %35 = arith.truncf %34 : vector<16x32xf32> to vector<16x32xbf16>
    %36 = vector.extract_strided_slice %29 {offsets = [0, 96], sizes = [16, 32], strides = [1, 1]} : vector<16x384xf32> to vector<16x32xf32>
    %37 = arith.truncf %36 : vector<16x32xf32> to vector<16x32xbf16>
    %38 = vector.shape_cast %31 : vector<16x32xbf16> to vector<1x16x32xbf16>
    %39 = vector.shape_cast %33 : vector<16x32xbf16> to vector<1x16x32xbf16>
    %40 = vector.shape_cast %35 : vector<16x32xbf16> to vector<1x16x32xbf16>
    %41 = vector.shape_cast %37 : vector<16x32xbf16> to vector<1x16x32xbf16>
    %42 = tpu.concatenate %38, %39, %40, %41 in 0 : vector<1x16x32xbf16>, vector<1x16x32xbf16>, vector<1x16x32xbf16>, vector<1x16x32xbf16> -> vector<4x16x32xbf16>
    %43 = vector.shape_cast %42 : vector<4x16x32xbf16> to vector<8x8x32xbf16>
    %44 = vector.extract_strided_slice %29 {offsets = [0, 128], sizes = [16, 32], strides = [1, 1]} : vector<16x384xf32> to vector<16x32xf32>
    %45 = arith.truncf %44 : vector<16x32xf32> to vector<16x32xbf16>
    %46 = vector.extract_strided_slice %29 {offsets = [0, 160], sizes = [16, 32], strides = [1, 1]} : vector<16x384xf32> to vector<16x32xf32>
    %47 = arith.truncf %46 : vector<16x32xf32> to vector<16x32xbf16>
    %48 = vector.extract_strided_slice %29 {offsets = [0, 192], sizes = [16, 32], strides = [1, 1]} : vector<16x384xf32> to vector<16x32xf32>
    %49 = arith.truncf %48 : vector<16x32xf32> to vector<16x32xbf16>
    %50 = vector.extract_strided_slice %29 {offsets = [0, 224], sizes = [16, 32], strides = [1, 1]} : vector<16x384xf32> to vector<16x32xf32>
    %51 = arith.truncf %50 : vector<16x32xf32> to vector<16x32xbf16>
    %52 = vector.shape_cast %45 : vector<16x32xbf16> to vector<1x16x32xbf16>
    %53 = vector.shape_cast %47 : vector<16x32xbf16> to vector<1x16x32xbf16>
    %54 = vector.shape_cast %49 : vector<16x32xbf16> to vector<1x16x32xbf16>
    %55 = vector.shape_cast %51 : vector<16x32xbf16> to vector<1x16x32xbf16>
    %56 = tpu.concatenate %52, %53, %54, %55 in 0 : vector<1x16x32xbf16>, vector<1x16x32xbf16>, vector<1x16x32xbf16>, vector<1x16x32xbf16> -> vector<4x16x32xbf16>
    %57 = vector.shape_cast %56 : vector<4x16x32xbf16> to vector<8x8x32xbf16>
    %58 = vector.extract_strided_slice %29 {offsets = [0, 256], sizes = [16, 32], strides = [1, 1]} : vector<16x384xf32> to vector<16x32xf32>
    %59 = arith.truncf %58 : vector<16x32xf32> to vector<16x32xbf16>
    %60 = vector.extract_strided_slice %29 {offsets = [0, 288], sizes = [16, 32], strides = [1, 1]} : vector<16x384xf32> to vector<16x32xf32>
    %61 = arith.truncf %60 : vector<16x32xf32> to vector<16x32xbf16>
    %62 = vector.extract_strided_slice %29 {offsets = [0, 320], sizes = [16, 32], strides = [1, 1]} : vector<16x384xf32> to vector<16x32xf32>
    %63 = arith.truncf %62 : vector<16x32xf32> to vector<16x32xbf16>
    %64 = vector.extract_strided_slice %29 {offsets = [0, 352], sizes = [16, 32], strides = [1, 1]} : vector<16x384xf32> to vector<16x32xf32>
    %65 = arith.truncf %64 : vector<16x32xf32> to vector<16x32xbf16>
    %66 = vector.shape_cast %59 : vector<16x32xbf16> to vector<1x16x32xbf16>
    %67 = vector.shape_cast %61 : vector<16x32xbf16> to vector<1x16x32xbf16>
    %68 = vector.shape_cast %63 : vector<16x32xbf16> to vector<1x16x32xbf16>
    %69 = vector.shape_cast %65 : vector<16x32xbf16> to vector<1x16x32xbf16>
    %70 = tpu.concatenate %66, %67, %68, %69 in 0 : vector<1x16x32xbf16>, vector<1x16x32xbf16>, vector<1x16x32xbf16>, vector<1x16x32xbf16> -> vector<4x16x32xbf16>
    %71 = vector.shape_cast %70 : vector<4x16x32xbf16> to vector<8x8x32xbf16>
    "tpu.trace_start"() <{level = 10 : i32, message = "gqd,gkd->gqk"}> : () -> ()
    %cst_15 = arith.constant dense<0.000000e+00> : vector<8x8x8xf32>
    %72 = tpu.matmul %43, %57, %cst_15 {dimension_numbers = #tpu.dot_dimension_numbers<[2], [2], [1], [1], [0, 0, 0, 1, 1, 1], [0], [0]>} : vector<8x8x32xbf16>, vector<8x8x32xbf16>, vector<8x8x8xf32> -> vector<8x8x8xf32>
    "tpu.trace_stop"() : () -> ()
    %cst_16 = arith.constant 0.176776692 : f32
    %73 = vector.broadcast %cst_16 : f32 to vector<8x8x8xf32>
    %74 = arith.mulf %72, %73 : vector<8x8x8xf32>
    %cst_17 = arith.constant dense<0xFF800000> : vector<8x8xf32>
    %75 = vector.multi_reduction <maximumf>, %74, %cst_17 [2] : vector<8x8x8xf32> to vector<8x8xf32>
    %76 = vector.shape_cast %75 : vector<8x8xf32> to vector<8x8x1xf32>
    %cst_18 = arith.constant -1.000000e+30 : f32
    %77 = vector.broadcast %cst_18 : f32 to vector<8x8x1xf32>
    %78 = arith.maximumf %76, %77 : vector<8x8x1xf32>
    %79 = vector.broadcast %78 : vector<8x8x1xf32> to vector<8x8x8xf32>
    %80 = arith.subf %74, %79 : vector<8x8x8xf32>
    %81 = math.exp %80 : vector<8x8x8xf32>
    %cst_19 = arith.constant dense<0.000000e+00> : vector<8x8xf32>
    %82 = vector.multi_reduction <add>, %81, %cst_19 [2] : vector<8x8x8xf32> to vector<8x8xf32>
    %83 = vector.shape_cast %82 : vector<8x8xf32> to vector<8x8x1xf32>
    %cst_20 = arith.constant 1.000000e-30 : f32
    %84 = vector.broadcast %cst_20 : f32 to vector<8x8x1xf32>
    %85 = arith.maximumf %83, %84 : vector<8x8x1xf32>
    %86 = vector.broadcast %85 : vector<8x8x1xf32> to vector<8x8x8xf32>
    %87 = arith.divf %81, %86 : vector<8x8x8xf32>
    %88 = arith.truncf %87 : vector<8x8x8xf32> to vector<8x8x8xbf16>
    "tpu.trace_start"() <{level = 10 : i32, message = "gqk,gkd->gqd"}> : () -> ()
    %cst_21 = arith.constant dense<0.000000e+00> : vector<8x8x32xf32>
    %89 = tpu.matmul %88, %71, %cst_21 {dimension_numbers = #tpu.dot_dimension_numbers<[2], [1], [1], [2], [0, 0, 0, 1, 1, 2], [0], [0]>} : vector<8x8x8xbf16>, vector<8x8x32xbf16>, vector<8x8x32xf32> -> vector<8x8x32xf32>
    "tpu.trace_stop"() : () -> ()
    %90 = vector.shape_cast %89 : vector<8x8x32xf32> to vector<4x16x32xf32>
    %91 = vector.extract_strided_slice %90 {offsets = [0, 0, 0], sizes = [1, 16, 32], strides = [1, 1, 1]} : vector<4x16x32xf32> to vector<1x16x32xf32>
    %92 = vector.shape_cast %91 : vector<1x16x32xf32> to vector<16x32xf32>
    %93 = vector.extract_strided_slice %90 {offsets = [1, 0, 0], sizes = [1, 16, 32], strides = [1, 1, 1]} : vector<4x16x32xf32> to vector<1x16x32xf32>
    %94 = vector.shape_cast %93 : vector<1x16x32xf32> to vector<16x32xf32>
    %95 = vector.extract_strided_slice %90 {offsets = [2, 0, 0], sizes = [1, 16, 32], strides = [1, 1, 1]} : vector<4x16x32xf32> to vector<1x16x32xf32>
    %96 = vector.shape_cast %95 : vector<1x16x32xf32> to vector<16x32xf32>
    %97 = vector.extract_strided_slice %90 {offsets = [3, 0, 0], sizes = [1, 16, 32], strides = [1, 1, 1]} : vector<4x16x32xf32> to vector<1x16x32xf32>
    %98 = vector.shape_cast %97 : vector<1x16x32xf32> to vector<16x32xf32>
    %99 = tpu.concatenate %92, %94, %96, %98 in 1 : vector<16x32xf32>, vector<16x32xf32>, vector<16x32xf32>, vector<16x32xf32> -> vector<16x128xf32>
    %100 = arith.truncf %99 : vector<16x128xf32> to vector<16x128xbf16>
    %c0_22 = arith.constant 0 : index
    %c0_23 = arith.constant 0 : index
    %101 = vector.load %arg6[%c0_22, %c0_23] : memref<128x128xbf16, #tpu.memory_space<vmem>>, vector<128x128xbf16>
    %cst_24 = arith.constant dense<0.000000e+00> : vector<16x128xf32>
    %102 = tpu.matmul %100, %101, %cst_24 {dimension_numbers = #tpu.dot_dimension_numbers<[1], [0], [0], [1], [0, 0, 1, 1], [], []>} : vector<16x128xbf16>, vector<128x128xbf16>, vector<16x128xf32> -> vector<16x128xf32>
    %c0_25 = arith.constant 0 : index
    %c0_26 = arith.constant 0 : index
    %103 = vector.load %arg7[%c0_25, %c0_26] : memref<1x128xf32, #tpu.memory_space<vmem>>, vector<1x128xf32>
    %104 = vector.broadcast %103 : vector<1x128xf32> to vector<16x128xf32>
    %105 = arith.addf %102, %104 : vector<16x128xf32>
    %106 = arith.addf %1, %105 : vector<16x128xf32>
    %c0_27 = arith.constant 0 : index
    %c0_28 = arith.constant 0 : index
    %107 = vector.load %arg8[%c0_27, %c0_28] : memref<1x128xf32, #tpu.memory_space<vmem>>, vector<1x128xf32>
    %c0_29 = arith.constant 0 : index
    %c0_30 = arith.constant 0 : index
    %108 = vector.load %arg9[%c0_29, %c0_30] : memref<1x128xf32, #tpu.memory_space<vmem>>, vector<1x128xf32>
    %cst_31 = arith.constant dense<0.000000e+00> : vector<16xf32>
    %109 = vector.multi_reduction <add>, %106, %cst_31 [1] : vector<16x128xf32> to vector<16xf32>
    %110 = vector.shape_cast %109 : vector<16xf32> to vector<16x1xf32>
    %cst_32 = arith.constant 1.280000e+02 : f32
    %111 = vector.broadcast %cst_32 : f32 to vector<16x1xf32>
    %112 = arith.divf %110, %111 : vector<16x1xf32>
    %113 = vector.broadcast %112 : vector<16x1xf32> to vector<16x128xf32>
    %114 = arith.subf %106, %113 : vector<16x128xf32>
    %115 = arith.mulf %114, %114 : vector<16x128xf32>
    %cst_33 = arith.constant dense<0.000000e+00> : vector<16xf32>
    %116 = vector.multi_reduction <add>, %115, %cst_33 [1] : vector<16x128xf32> to vector<16xf32>
    %117 = vector.shape_cast %116 : vector<16xf32> to vector<16x1xf32>
    %cst_34 = arith.constant 1.280000e+02 : f32
    %118 = vector.broadcast %cst_34 : f32 to vector<16x1xf32>
    %119 = arith.divf %117, %118 : vector<16x1xf32>
    %cst_35 = arith.constant 9.99999974E-6 : f32
    %120 = vector.broadcast %cst_35 : f32 to vector<16x1xf32>
    %121 = arith.addf %119, %120 : vector<16x1xf32>
    %122 = math.rsqrt %121 : vector<16x1xf32>
    %123 = vector.broadcast %122 : vector<16x1xf32> to vector<16x128xf32>
    %124 = arith.mulf %114, %123 : vector<16x128xf32>
    %125 = vector.broadcast %107 : vector<1x128xf32> to vector<16x128xf32>
    %126 = arith.mulf %124, %125 : vector<16x128xf32>
    %127 = vector.broadcast %108 : vector<1x128xf32> to vector<16x128xf32>
    %128 = arith.addf %126, %127 : vector<16x128xf32>
    %129 = arith.truncf %128 : vector<16x128xf32> to vector<16x128xbf16>
    %c0_36 = arith.constant 0 : index
    %c0_37 = arith.constant 0 : index
    %130 = vector.load %arg10[%c0_36, %c0_37] : memref<128x512xbf16, #tpu.memory_space<vmem>>, vector<128x512xbf16>
    %cst_38 = arith.constant dense<0.000000e+00> : vector<16x512xf32>
    %131 = tpu.matmul %129, %130, %cst_38 {dimension_numbers = #tpu.dot_dimension_numbers<[1], [0], [0], [1], [0, 0, 1, 1], [], []>} : vector<16x128xbf16>, vector<128x512xbf16>, vector<16x512xf32> -> vector<16x512xf32>
    %c0_39 = arith.constant 0 : index
    %c0_40 = arith.constant 0 : index
    %132 = vector.load %arg11[%c0_39, %c0_40] : memref<1x512xf32, #tpu.memory_space<vmem>>, vector<1x512xf32>
    %133 = vector.broadcast %132 : vector<1x512xf32> to vector<16x512xf32>
    %134 = arith.addf %131, %133 : vector<16x512xf32>
    %cst_41 = arith.constant 1.702000e+00 : f32
    %135 = vector.broadcast %cst_41 : f32 to vector<16x512xf32>
    %136 = arith.mulf %135, %134 : vector<16x512xf32>
    %137 = arith.negf %136 : vector<16x512xf32>
    %138 = math.exp %137 : vector<16x512xf32>
    %cst_42 = arith.constant 1.000000e+00 : f32
    %139 = vector.broadcast %cst_42 : f32 to vector<16x512xf32>
    %140 = arith.addf %139, %138 : vector<16x512xf32>
    %141 = arith.divf %139, %140 : vector<16x512xf32>
    %142 = arith.mulf %134, %141 : vector<16x512xf32>
    %143 = arith.truncf %142 : vector<16x512xf32> to vector<16x512xbf16>
    %c0_43 = arith.constant 0 : index
    %c0_44 = arith.constant 0 : index
    %144 = vector.load %arg12[%c0_43, %c0_44] : memref<512x128xbf16, #tpu.memory_space<vmem>>, vector<512x128xbf16>
    %cst_45 = arith.constant dense<0.000000e+00> : vector<16x128xf32>
    %145 = tpu.matmul %143, %144, %cst_45 {dimension_numbers = #tpu.dot_dimension_numbers<[1], [0], [0], [1], [0, 0, 1, 1], [], []>} : vector<16x512xbf16>, vector<512x128xbf16>, vector<16x128xf32> -> vector<16x128xf32>
    %c0_46 = arith.constant 0 : index
    %c0_47 = arith.constant 0 : index
    %146 = vector.load %arg13[%c0_46, %c0_47] : memref<1x128xf32, #tpu.memory_space<vmem>>, vector<1x128xf32>
    %147 = vector.broadcast %146 : vector<1x128xf32> to vector<16x128xf32>
    %148 = arith.addf %145, %147 : vector<16x128xf32>
    %149 = arith.addf %106, %148 : vector<16x128xf32>
    %150 = vector.shape_cast %149 : vector<16x128xf32> to vector<2x8x128xf32>
    %c0_48 = arith.constant 0 : index
    %c0_49 = arith.constant 0 : index
    %c0_50 = arith.constant 0 : index
    %151 = vector.load %arg14[%c0_48, %c0_49, %c0_50] : memref<2x8x128xf32, #tpu.memory_space<vmem>>, vector<2x8x128xf32>
    tpu.vector_store %arg14[%c0_48, %c0_49, %c0_50], %150 {strides = array<i32>} : memref<2x8x128xf32, #tpu.memory_space<vmem>>, vector<2x8x128xf32>,
    return
  }
  func.func @transform_0(%arg0: i32) -> (i32, i32, i32) {
    %c0_i32 = arith.constant 0 : i32
    %c0_i32_0 = arith.constant 0 : i32
    %c0_i32_1 = arith.constant 0 : i32
    return %arg0, %c0_i32, %c0_i32_0 : i32, i32, i32
  }
  func.func @transform_1(%arg0: i32) -> (i32, i32) {
    %c0_i32 = arith.constant 0 : i32
    %c0_i32_0 = arith.constant 0 : i32
    %c0_i32_1 = arith.constant 0 : i32
    return %c0_i32, %c0_i32_0 : i32, i32
  }
  func.func @transform_2(%arg0: i32) -> (i32, i32) {
    %c0_i32 = arith.constant 0 : i32
    %c0_i32_0 = arith.constant 0 : i32
    %c0_i32_1 = arith.constant 0 : i32
    return %c0_i32, %c0_i32_0 : i32, i32
  }
  func.func @transform_3(%arg0: i32) -> (i32, i32) {
    %c0_i32 = arith.constant 0 : i32
    %c0_i32_0 = arith.constant 0 : i32
    %c0_i32_1 = arith.constant 0 : i32
    return %c0_i32, %c0_i32_0 : i32, i32
  }
  func.func @transform_4(%arg0: i32) -> (i32, i32) {
    %c0_i32 = arith.constant 0 : i32
    %c0_i32_0 = arith.constant 0 : i32
    %c0_i32_1 = arith.constant 0 : i32
    return %c0_i32, %c0_i32_0 : i32, i32
  }
  func.func @transform_5(%arg0: i32) -> (i32, i32) {
    %c0_i32 = arith.constant 0 : i32
    %c0_i32_0 = arith.constant 0 : i32
    %c0_i32_1 = arith.constant 0 : i32
    return %c0_i32, %c0_i32_0 : i32, i32
  }
  func.func @transform_6(%arg0: i32) -> (i32, i32) {
    %c0_i32 = arith.constant 0 : i32
    %c0_i32_0 = arith.constant 0 : i32
    %c0_i32_1 = arith.constant 0 : i32
    return %c0_i32, %c0_i32_0 : i32, i32
  }
  func.func @transform_7(%arg0: i32) -> (i32, i32) {
    %c0_i32 = arith.constant 0 : i32
    %c0_i32_0 = arith.constant 0 : i32
    %c0_i32_1 = arith.constant 0 : i32
    return %c0_i32, %c0_i32_0 : i32, i32
  }
  func.func @transform_8(%arg0: i32) -> (i32, i32) {
    %c0_i32 = arith.constant 0 : i32
    %c0_i32_0 = arith.constant 0 : i32
    %c0_i32_1 = arith.constant 0 : i32
    return %c0_i32, %c0_i32_0 : i32, i32
  }
  func.func @transform_9(%arg0: i32) -> (i32, i32) {
    %c0_i32 = arith.constant 0 : i32
    %c0_i32_0 = arith.constant 0 : i32
    %c0_i32_1 = arith.constant 0 : i32
    return %c0_i32, %c0_i32_0 : i32, i32
  }
  func.func @transform_10(%arg0: i32) -> (i32, i32) {
    %c0_i32 = arith.constant 0 : i32
    %c0_i32_0 = arith.constant 0 : i32
    %c0_i32_1 = arith.constant 0 : i32
    return %c0_i32, %c0_i32_0 : i32, i32
  }
  func.func @transform_11(%arg0: i32) -> (i32, i32) {
    %c0_i32 = arith.constant 0 : i32
    %c0_i32_0 = arith.constant 0 : i32
    %c0_i32_1 = arith.constant 0 : i32
    return %c0_i32, %c0_i32_0 : i32, i32
  }
  func.func @transform_12(%arg0: i32) -> (i32, i32) {
    %c0_i32 = arith.constant 0 : i32
    %c0_i32_0 = arith.constant 0 : i32
    %c0_i32_1 = arith.constant 0 : i32
    return %c0_i32, %c0_i32_0 : i32, i32
  }
  func.func @transform_13(%arg0: i32) -> (i32, i32, i32) {
    %c0_i32 = arith.constant 0 : i32
    %c0_i32_0 = arith.constant 0 : i32
    %c0_i32_1 = arith.constant 0 : i32
    return %arg0, %c0_i32, %c0_i32_0 : i32, i32, i32
  }
}

</mosaic_0001>

<llo_original>
// kernel: tpu_custom_call.1
$region0: #{tpu_custom_call.1}
  #allocation0 [shape = 'u32[]', space=smem, size = 0x4, offset = 0x4, fixed_abs, tag = 'smem constant byte address 0x4 - core index']
  #allocation1 [shape = 'u32[144,128]{1,0:T(1,128)}', space=vmem, size = 0x12000, scoped, tag = 'internal scratch']
  %s0 = inlined_call_operand.hbm [shape: f32[2,8,128], index: 0, kind: input, shape index: {}]
  %s1 = inlined_call_operand.hbm [shape: f32[1,128], index: 1, kind: input, shape index: {}]
  %s2 = inlined_call_operand.hbm [shape: f32[1,128], index: 2, kind: input, shape index: {}]
  %s3 = inlined_call_operand.hbm [shape: bf16[128,384], index: 3, kind: input, shape index: {}]
  %s4 = inlined_call_operand.vmem [shape: f32[1,384], index: 4, kind: input, shape index: {}]
  %s5 = inlined_call_operand.hbm [shape: bf16[128,128], index: 5, kind: input, shape index: {}]
  %s6 = inlined_call_operand.vmem [shape: f32[1,128], index: 6, kind: input, shape index: {}]
  %s7 = inlined_call_operand.vmem [shape: f32[1,128], index: 7, kind: input, shape index: {}]
  %s8 = inlined_call_operand.vmem [shape: f32[1,128], index: 8, kind: input, shape index: {}]
  %s9 = inlined_call_operand.hbm [shape: bf16[128,512], index: 9, kind: input, shape index: {}]
  %s10 = inlined_call_operand.vmem [shape: f32[1,512], index: 10, kind: input, shape index: {}]
  %s11 = inlined_call_operand.hbm [shape: bf16[512,128], index: 11, kind: input, shape index: {}]
  %s12 = inlined_call_operand.vmem [shape: f32[1,128], index: 12, kind: input, shape index: {}]
  %s13 = inlined_call_operand.hbm [shape: f32[2,8,128], index: 13, kind: output, shape index: {}]
  %s14 = sld [smem:[#allocation0]]
  $region90: #{tpu_custom_call.1} parent=0
    _
  %s16 = ssub.s32 1, %s14
  %s17 = scalar_select 0, %s16, %s14
  $region1: #{tpu_custom_call.1} parent=0
    #allocation2 [shape = 'u8[8192]{0}', space=vmem, size = 0x2000, scoped, tag = 'input window, operand 0, single buffered']
    #allocation3 [shape = 's32[1]{0}', space=sflag, size = 0x4, scoped, tag = 'scoped memory for tpu_custom_call.1']
    #allocation4 [shape = 's32[1]{0}', space=sflag, size = 0x4, scoped, tag = 'scoped memory for tpu_custom_call.1']
    #allocation5 [shape = 'u8[512]{0}', space=vmem, size = 0x400, scoped, tag = 'input window, operand 1, single buffered']
    #allocation6 [shape = 's32[1]{0}', space=sflag, size = 0x4, scoped, tag = 'scoped memory for tpu_custom_call.1']
    #allocation7 [shape = 'u8[512]{0}', space=vmem, size = 0x400, scoped, tag = 'input window, operand 2, single buffered']
    #allocation8 [shape = 'u8[98304]{0}', space=vmem, size = 0x18000, scoped, tag = 'input window, operand 3, single buffered']
    #allocation9 [shape = 's32[1]{0}', space=sflag, size = 0x4, scoped, tag = 'scoped memory for tpu_custom_call.1']
    #allocation10 [shape = 'u8[32768]{0}', space=vmem, size = 0x8000, scoped, tag = 'input window, operand 5, single buffered']
    #allocation11 [shape = 'u8[131072]{0}', space=vmem, size = 0x20000, scoped, tag = 'input window, operand 9, single buffered']
    #allocation12 [shape = 's32[1]{0}', space=sflag, size = 0x4, scoped, tag = 'scoped memory for tpu_custom_call.1']
    #allocation13 [shape = 'u8[131072]{0}', space=vmem, size = 0x20000, scoped, tag = 'input window, operand 11, single buffered']
    #allocation14 [shape = 'u8[8192]{0}', space=vmem, size = 0x2000, scoped, tag = 'output window, operand 0, single buffered']
    %18 = vsyncpa [#allocation3], 0
    %19 = vsyncpa [#allocation6], 0
    %20 = vsyncpa [#allocation9], 0
    %21 = vsyncpa [#allocation12], 0
    %22 = vsyncpa [#allocation4], 0
    // Predicated region
    $region2: #{tpu_custom_call.1} parent=1 // pred_check
      _
    $region3: #{tpu_custom_call.1} parent=1 // pred_check_branch
      %24 = sbr.rel (0) target = $region5
    $region4: #{tpu_custom_call.1} parent=1 // pred_region
      %s26 = ssub.s32 256, 256
      %27 = vsyncadd [#allocation3], %s26
      %s28 = sshll.u32 [#allocation2], 4
      %s29 = int_to_ptr.vmem [resolvable:$true] %s28
      %34 = dma.hbm_to_vmem [thread:$0]  %s0, 256, %s29, [#allocation3], 128, 128, 8
    $region5: #{tpu_custom_call.1} parent=1 // pred_fallthru
      _
    // Predicated region
    $region6: #{tpu_custom_call.1} parent=1 // pred_check
      _
    $region7: #{tpu_custom_call.1} parent=1 // pred_check_branch
      %36 = sbr.rel (0) target = $region9
    $region8: #{tpu_custom_call.1} parent=1 // pred_region
      %s38 = ssub.s32 16, 16
      %39 = vsyncadd [#allocation6], %s38
      %s41 = sshll.u32 [#allocation5], 4
      %s42 = int_to_ptr.vmem [resolvable:$true] %s41
      %44 = dma.hbm_to_vmem [thread:$0]  %s1, 16, %s42, [#allocation6]
    $region9: #{tpu_custom_call.1} parent=1 // pred_fallthru
      _
    // Predicated region
    $region10: #{tpu_custom_call.1} parent=1 // pred_check
      _
    $region11: #{tpu_custom_call.1} parent=1 // pred_check_branch
      %46 = sbr.rel (0) target = $region13
    $region12: #{tpu_custom_call.1} parent=1 // pred_region
      %s48 = ssub.s32 16, 16
      %49 = vsyncadd [#allocation6], %s48
      %s51 = sshll.u32 [#allocation7], 4
      %s52 = int_to_ptr.vmem [resolvable:$true] %s51
      %54 = dma.hbm_to_vmem [thread:$0]  %s2, 16, %s52, [#allocation6]
    $region13: #{tpu_custom_call.1} parent=1 // pred_fallthru
      _
    // Predicated region
    $region14: #{tpu_custom_call.1} parent=1 // pred_check
      _
    $region15: #{tpu_custom_call.1} parent=1 // pred_check_branch
      %56 = sbr.rel (0) target = $region17
    $region16: #{tpu_custom_call.1} parent=1 // pred_region
      %s58 = ssub.s32 3072, 3072
      %59 = vsyncadd [#allocation9], %s58
      %s60 = sshll.u32 [#allocation8], 4
      %s61 = int_to_ptr.vmem [resolvable:$true] %s60
      %66 = dma.hbm_to_vmem [thread:$0]  %s3, 3072, %s61, [#allocation9], 192, 192, 12
    $region17: #{tpu_custom_call.1} parent=1 // pred_fallthru
      _
    // Predicated region
    $region18: #{tpu_custom_call.1} parent=1 // pred_check
      _
    $region19: #{tpu_custom_call.1} parent=1 // pred_check_branch
      %68 = sbr.rel (0) target = $region21
    $region20: #{tpu_custom_call.1} parent=1 // pred_region
      _
    $region21: #{tpu_custom_call.1} parent=1 // pred_fallthru
      _
    // Predicated region
    $region22: #{tpu_custom_call.1} parent=1 // pred_check
      _
    $region23: #{tpu_custom_call.1} parent=1 // pred_check_branch
      %70 = sbr.rel (0) target = $region25
    $region24: #{tpu_custom_call.1} parent=1 // pred_region
      %s72 = ssub.s32 1024, 1024
      %73 = vsyncadd [#allocation9], %s72
      %s74 = sshll.u32 [#allocation10], 4
      %s75 = int_to_ptr.vmem [resolvable:$true] %s74
      %80 = dma.hbm_to_vmem [thread:$0]  %s5, 1024, %s75, [#allocation9], 64, 64, 4
    $region25: #{tpu_custom_call.1} parent=1 // pred_fallthru
      _
    // Predicated region
    $region26: #{tpu_custom_call.1} parent=1 // pred_check
      _
    $region27: #{tpu_custom_call.1} parent=1 // pred_check_branch
      %82 = sbr.rel (0) target = $region29
    $region28: #{tpu_custom_call.1} parent=1 // pred_region
      _
    $region29: #{tpu_custom_call.1} parent=1 // pred_fallthru
      _
    // Predicated region
    $region30: #{tpu_custom_call.1} parent=1 // pred_check
      _
    $region31: #{tpu_custom_call.1} parent=1 // pred_check_branch
      %84 = sbr.rel (0) target = $region33
    $region32: #{tpu_custom_call.1} parent=1 // pred_region
      _
    $region33: #{tpu_custom_call.1} parent=1 // pred_fallthru
      _
    // Predicated region
    $region34: #{tpu_custom_call.1} parent=1 // pred_check
      _
    $region35: #{tpu_custom_call.1} parent=1 // pred_check_branch
      %86 = sbr.rel (0) target = $region37
    $region36: #{tpu_custom_call.1} parent=1 // pred_region
      _
    $region37: #{tpu_custom_call.1} parent=1 // pred_fallthru
      _
    // Predicated region
    $region38: #{tpu_custom_call.1} parent=1 // pred_check
      _
    $region39: #{tpu_custom_call.1} parent=1 // pred_check_branch
      %88 = sbr.rel (0) target = $region41
    $region40: #{tpu_custom_call.1} parent=1 // pred_region
      %s90 = ssub.s32 4096, 4096
      %91 = vsyncadd [#allocation12], %s90
      %s92 = sshll.u32 [#allocation11], 4
      %s93 = int_to_ptr.vmem [resolvable:$true] %s92
      %98 = dma.hbm_to_vmem [thread:$0]  %s9, 4096, %s93, [#allocation12], 256, 256, 16
    $region41: #{tpu_custom_call.1} parent=1 // pred_fallthru
      _
    // Predicated region
    $region42: #{tpu_custom_call.1} parent=1 // pred_check
      _
    $region43: #{tpu_custom_call.1} parent=1 // pred_check_branch
      %100 = sbr.rel (0) target = $region45
    $region44: #{tpu_custom_call.1} parent=1 // pred_region
      _
    $region45: #{tpu_custom_call.1} parent=1 // pred_fallthru
      _
    // Predicated region
    $region46: #{tpu_custom_call.1} parent=1 // pred_check
      _
    $region47: #{tpu_custom_call.1} parent=1 // pred_check_branch
      %102 = sbr.rel (0) target = $region49
    $region48: #{tpu_custom_call.1} parent=1 // pred_region
      %s104 = ssub.s32 4096, 4096
      %105 = vsyncadd [#allocation12], %s104
      %s106 = sshll.u32 [#allocation13], 4
      %s107 = int_to_ptr.vmem [resolvable:$true] %s106
      %112 = dma.hbm_to_vmem [thread:$0]  %s11, 4096, %s107, [#allocation12], 64, 64, 4
    $region49: #{tpu_custom_call.1} parent=1 // pred_fallthru
      _
    // Predicated region
    $region50: #{tpu_custom_call.1} parent=1 // pred_check
      _
    $region51: #{tpu_custom_call.1} parent=1 // pred_check_branch
      %114 = sbr.rel (0) target = $region53
    $region52: #{tpu_custom_call.1} parent=1 // pred_region
      _
    $region53: #{tpu_custom_call.1} parent=1 // pred_fallthru
      _
    // Predicated region
    $region54: #{tpu_custom_call.1} parent=1 // pred_check
      _
    $region55: #{tpu_custom_call.1} parent=1 // pred_check_branch
      %116 = sbr.rel (0) target = $region57
    $region56: #{tpu_custom_call.1} parent=1 // pred_region
      %117 = dma.done [#allocation3], 256
    $region57: #{tpu_custom_call.1} parent=1 // pred_fallthru
      _
    // Predicated region
    $region58: #{tpu_custom_call.1} parent=1 // pred_check
      _
    $region59: #{tpu_custom_call.1} parent=1 // pred_check_branch
      %119 = sbr.rel (0) target = $region61
    $region60: #{tpu_custom_call.1} parent=1 // pred_region
      %120 = dma.done [#allocation6], 16
    $region61: #{tpu_custom_call.1} parent=1 // pred_fallthru
      _
    // Predicated region
    $region62: #{tpu_custom_call.1} parent=1 // pred_check
      _
    $region63: #{tpu_custom_call.1} parent=1 // pred_check_branch
      %122 = sbr.rel (0) target = $region65
    $region64: #{tpu_custom_call.1} parent=1 // pred_region
      %123 = dma.done [#allocation6], 16
    $region65: #{tpu_custom_call.1} parent=1 // pred_fallthru
      _
    // Predicated region
    $region66: #{tpu_custom_call.1} parent=1 // pred_check
      _
    $region67: #{tpu_custom_call.1} parent=1 // pred_check_branch
      %125 = sbr.rel (0) target = $region69
    $region68: #{tpu_custom_call.1} parent=1 // pred_region
      %126 = dma.done [#allocation9], 3072
    $region69: #{tpu_custom_call.1} parent=1 // pred_fallthru
      _
    // Predicated region
    $region70: #{tpu_custom_call.1} parent=1 // pred_check
      _
    $region71: #{tpu_custom_call.1} parent=1 // pred_check_branch
      %128 = sbr.rel (0) target = $region73
    $region72: #{tpu_custom_call.1} parent=1 // pred_region
      %129 = dma.done [#allocation9], 1024
    $region73: #{tpu_custom_call.1} parent=1 // pred_fallthru
      _
    // Predicated region
    $region74: #{tpu_custom_call.1} parent=1 // pred_check
      _
    $region75: #{tpu_custom_call.1} parent=1 // pred_check_branch
      %131 = sbr.rel (0) target = $region77
    $region76: #{tpu_custom_call.1} parent=1 // pred_region
      %132 = dma.done [#allocation12], 4096
    $region77: #{tpu_custom_call.1} parent=1 // pred_fallthru
      _
    // Predicated region
    $region78: #{tpu_custom_call.1} parent=1 // pred_check
      _
    $region79: #{tpu_custom_call.1} parent=1 // pred_check_branch
      %134 = sbr.rel (0) target = $region81
    $region80: #{tpu_custom_call.1} parent=1 // pred_region
      %135 = dma.done [#allocation12], 4096
    $region81: #{tpu_custom_call.1} parent=1 // pred_fallthru
      _
    %v137 = vld [vmem:[#allocation2] sm:$0xff]
    %v138 = vld [vmem:[#allocation2 + $0x8] sm:$0xff]
    %v139 = vld [vmem:[#allocation5] sm:$0x1]
    %v140 = vld [vmem:[#allocation7] sm:$0x1]
    %141 = vadd.xlane.f32.xlu0 %v137
    %v142 = vpop.xlane.xlu0 %141
    %143 = vadd.xlane.f32.xlu0 %v138
    %v144 = vpop.xlane.xlu0 %143
    %v145 = vrcp.pop 128.0
    %v146 = vmul.f32 %v142, %v145
    %v147 = vmul.f32 %v144, %v145
    %v148 = vsub.f32 %v137, %v146
    %v149 = vsub.f32 %v138, %v147
    %v150 = vmul.f32 %v148, %v148
    %v151 = vmul.f32 %v149, %v149
    %152 = vadd.xlane.f32.xlu0 %v150
    %v153 = vpop.xlane.xlu0 %152
    %154 = vadd.xlane.f32.xlu0 %v151
    %v155 = vpop.xlane.xlu0 %154
    %v156 = vmul.f32 %v153, %v145
    %v157 = vmul.f32 %v155, %v145
    %v158 = vadd.f32 %v156, 1e-05
    %v159 = vadd.f32 %v157, 1e-05
    %v160 = vrsqrt.pop %v158
    %v161 = vrsqrt.pop %v159
    %v162 = vmul.f32 %v148, %v160
    %v163 = vmul.f32 %v149, %v161
    %v165 = vlaneseq
    %v166 = vshrl.u32 %v165, 7
    %v167 = vsub.s32 0, %v166
    %v168 = vrot.slane %v139, %v167
    %v170 = vmul.f32 %v162, %v168
    %v171 = vmul.f32 %v163, %v168
    %v173 = vlaneseq
    %v174 = vshrl.u32 %v173, 7
    %v175 = vsub.s32 0, %v174
    %v176 = vrot.slane %v140, %v175
    %v178 = vadd.f32 %v170, %v176
    %v179 = vadd.f32 %v171, %v176
    %v180 = vpack.c.bf16 %v179, %v178
    %v181 = vld [vmem:[#allocation8] sm:$0xff]
    %v182 = vld [vmem:[#allocation8 + $0x8] sm:$0xf]
    %v183 = vld [vmem:[#allocation8 + $0xc] sm:$0xff]
    %v184 = vld [vmem:[#allocation8 + $0x14] sm:$0xf]
    %v185 = vld [vmem:[#allocation8 + $0x18] sm:$0xff]
    %v186 = vld [vmem:[#allocation8 + $0x20] sm:$0xf]
    %v187 = vld [vmem:[#allocation8 + $0x24] sm:$0xff]
    %v188 = vld [vmem:[#allocation8 + $0x2c] sm:$0xf]
    %v189 = vld [vmem:[#allocation8 + $0x30] sm:$0xff]
    %v190 = vld [vmem:[#allocation8 + $0x38] sm:$0xf]
    %v191 = vld [vmem:[#allocation8 + $0x3c] sm:$0xff]
    %v192 = vld [vmem:[#allocation8 + $0x44] sm:$0xf]
    %v193 = vld [vmem:[#allocation8 + $0x48] sm:$0xff]
    %v194 = vld [vmem:[#allocation8 + $0x50] sm:$0xf]
    %v195 = vld [vmem:[#allocation8 + $0x54] sm:$0xff]
    %v196 = vld [vmem:[#allocation8 + $0x5c] sm:$0xf]
    %v197 = vld [vmem:[#allocation8 + $0x60] sm:$0xff]
    %v198 = vld [vmem:[#allocation8 + $0x68] sm:$0xf]
    %v199 = vld [vmem:[#allocation8 + $0x6c] sm:$0xff]
    %v200 = vld [vmem:[#allocation8 + $0x74] sm:$0xf]
    %v201 = vld [vmem:[#allocation8 + $0x78] sm:$0xff]
    %v202 = vld [vmem:[#allocation8 + $0x80] sm:$0xf]
    %v203 = vld [vmem:[#allocation8 + $0x84] sm:$0xff]
    %v204 = vld [vmem:[#allocation8 + $0x8c] sm:$0xf]
    %v205 = vld [vmem:[#allocation8 + $0x90] sm:$0xff]
    %v206 = vld [vmem:[#allocation8 + $0x98] sm:$0xf]
    %v207 = vld [vmem:[#allocation8 + $0x9c] sm:$0xff]
    %v208 = vld [vmem:[#allocation8 + $0xa4] sm:$0xf]
    %v209 = vld [vmem:[#allocation8 + $0xa8] sm:$0xff]
    %v210 = vld [vmem:[#allocation8 + $0xb0] sm:$0xf]
    %v211 = vld [vmem:[#allocation8 + $0xb4] sm:$0xff]
    %v212 = vld [vmem:[#allocation8 + $0xbc] sm:$0xf]
    %v213 = vld [vmem:[%s4] sm:$0x7]
    %v215 = vlaneseq
    %v216 = vshrl.u32 %v215, 7
    %v217 = vsub.s32 0, %v216
    %v218 = vrot.slane %v213, %v217
    %v219 = vlaneseq
    %v220 = vshrl.u32 %v219, 7
    %v221 = vsub.s32 1, %v220
    %v222 = vrot.slane %v213, %v221
    %v223 = vlaneseq
    %v224 = vshrl.u32 %v223, 7
    %v225 = vsub.s32 2, %v224
    %v226 = vrot.slane %v213, %v225
    %v262 = vunpack.c.l.b16 %v181
    %v263 = vunpack.c.h.b16 %v181
    %v264 = vunpack.c.l.b16 %v182
    %v265 = vunpack.c.l.b16 %v183
    %v266 = vunpack.c.h.b16 %v183
    %v267 = vunpack.c.l.b16 %v184
    %v268 = vunpack.c.l.b16 %v185
    %v269 = vunpack.c.h.b16 %v185
    %v270 = vunpack.c.l.b16 %v186
    %v271 = vunpack.c.l.b16 %v187
    %v272 = vunpack.c.h.b16 %v187
    %v273 = vunpack.c.l.b16 %v188
    %v274 = vunpack.c.l.b16 %v189
    %v275 = vunpack.c.h.b16 %v189
    %v276 = vunpack.c.l.b16 %v190
    %v277 = vunpack.c.l.b16 %v191
    %v278 = vunpack.c.h.b16 %v191
    %v279 = vunpack.c.l.b16 %v192
    %v280 = vunpack.c.l.b16 %v193
    %v281 = vunpack.c.h.b16 %v193
    %v282 = vunpack.c.l.b16 %v194
    %v283 = vunpack.c.l.b16 %v195
    %v284 = vunpack.c.h.b16 %v195
    %v285 = vunpack.c.l.b16 %v196
    %v286 = vunpack.c.l.b16 %v197
    %v287 = vunpack.c.h.b16 %v197
    %v288 = vunpack.c.l.b16 %v198
    %v289 = vunpack.c.l.b16 %v199
    %v290 = vunpack.c.h.b16 %v199
    %v291 = vunpack.c.l.b16 %v200
    %v292 = vunpack.c.l.b16 %v201
    %v293 = vunpack.c.h.b16 %v201
    %v294 = vunpack.c.l.b16 %v202
    %v295 = vunpack.c.l.b16 %v203
    %v296 = vunpack.c.h.b16 %v203
    %v297 = vunpack.c.l.b16 %v204
    %v298 = vunpack.c.l.b16 %v205
    %v299 = vunpack.c.h.b16 %v205
    %v300 = vunpack.c.l.b16 %v206
    %v301 = vunpack.c.l.b16 %v207
    %v302 = vunpack.c.h.b16 %v207
    %v303 = vunpack.c.l.b16 %v208
    %v304 = vunpack.c.l.b16 %v209
    %v305 = vunpack.c.h.b16 %v209
    %v306 = vunpack.c.l.b16 %v210
    %v307 = vunpack.c.l.b16 %v211
    %v308 = vunpack.c.h.b16 %v211
    %v309 = vunpack.c.l.b16 %v212
    %v310 = vpack.c.b16 %v265, %v262
    %v311 = vpack.c.b16 %v266, %v263
    %v312 = vpack.c.b16 %v267, %v264
    %v313 = vpack.c.b16 %v271, %v268
    %v314 = vpack.c.b16 %v272, %v269
    %v315 = vpack.c.b16 %v273, %v270
    %v316 = vpack.c.b16 %v277, %v274
    %v317 = vpack.c.b16 %v278, %v275
    %v318 = vpack.c.b16 %v279, %v276
    %v319 = vpack.c.b16 %v283, %v280
    %v320 = vpack.c.b16 %v284, %v281
    %v321 = vpack.c.b16 %v285, %v282
    %v322 = vpack.c.b16 %v289, %v286
    %v323 = vpack.c.b16 %v290, %v287
    %v324 = vpack.c.b16 %v291, %v288
    %v325 = vpack.c.b16 %v295, %v292
    %v326 = vpack.c.b16 %v296, %v293
    %v327 = vpack.c.b16 %v297, %v294
    %v328 = vpack.c.b16 %v301, %v298
    %v329 = vpack.c.b16 %v302, %v299
    %v330 = vpack.c.b16 %v303, %v300
    %v331 = vpack.c.b16 %v307, %v304
    %v332 = vpack.c.b16 %v308, %v305
    %v333 = vpack.c.b16 %v309, %v306
    %358 = vmatprep.subr.bf16.mxu0 %v311
    %359 = vmatpush1.bf16.msra.mxu0 %v310
    %360 = vmatprep.subr.bf16.mxu0 %v314
    %361 = vmatpush1.bf16.msra.mxu0 %v313
    %362 = vmatprep.subr.bf16.mxu0 %v317
    %363 = vmatpush1.bf16.msra.mxu0 %v316
    %364 = vmatprep.subr.bf16.mxu0 %v320
    %365 = vmatpush1.bf16.msra.mxu0 %v319
    %366 = vmatprep.subr.bf16.mxu0 %v323
    %367 = vmatpush1.bf16.msra.mxu0 %v322
    %368 = vmatprep.subr.bf16.mxu0 %v326
    %369 = vmatpush1.bf16.msra.mxu0 %v325
    %370 = vmatprep.subr.bf16.mxu0 %v329
    %371 = vmatpush1.bf16.msra.mxu0 %v328
    %372 = vmatprep.subr.bf16.mxu0 %v332
    %373 = vmatpush1.bf16.msra.mxu0 %v331
    %374 = vmatprep.subr.bf16.mxu0 0
    %375 = vmatpush1.bf16.msra.mxu0 0
    %376 = vmatprep.subr.bf16.mxu0 0
    %377 = vmatpush1.bf16.msra.mxu0 0
    %378 = vmatprep.subr.bf16.mxu0 0
    %379 = vmatpush1.bf16.msra.mxu0 0
    %380 = vmatprep.subr.bf16.mxu0 0
    %381 = vmatpush1.bf16.msra.mxu0 0
    %382 = vmatprep.subr.bf16.mxu0 0
    %383 = vmatpush1.bf16.msra.mxu0 0
    %384 = vmatprep.subr.bf16.mxu0 0
    %385 = vmatpush1.bf16.msra.mxu0 0
    %386 = vmatprep.subr.bf16.mxu0 0
    %387 = vmatpush1.bf16.msra.mxu0 0
    %388 = vmatprep.subr.bf16.mxu0 0
    %389 = vmatpush1.bf16.msra.mxu0 0
    %390 = vmatprep.mubr.bf16.mxu0 0
    %391 = vmatmul.mubr.bf16.gmra.mrb[0].mxu0 %v180
    %v392 = vpop.f32.mrb[0].mxu0
    %v393 = vadd.f32 %v218, %v392
    %v394 = vpop.f32.mrb[0].mxu0
    %v395 = vadd.f32 %v222, %v394
    %v396 = vpop.f32.mrb[0].mxu0
    %v397 = vadd.f32 %v218, %v396
    %v398 = vpop.f32.mrb[0].mxu0
    %v399 = vadd.f32 %v222, %v398
    %400 = vdwg.mxu0
    %401 = vmatprep.subr.bf16.mxu0 0
    %402 = vmatpush1.bf16.msra.mxu0 %v312
    %403 = vmatprep.subr.bf16.mxu0 0
    %404 = vmatpush1.bf16.msra.mxu0 %v315
    %405 = vmatprep.subr.bf16.mxu0 0
    %406 = vmatpush1.bf16.msra.mxu0 %v318
    %407 = vmatprep.subr.bf16.mxu0 0
    %408 = vmatpush1.bf16.msra.mxu0 %v321
    %409 = vmatprep.subr.bf16.mxu0 0
    %410 = vmatpush1.bf16.msra.mxu0 %v324
    %411 = vmatprep.subr.bf16.mxu0 0
    %412 = vmatpush1.bf16.msra.mxu0 %v327
    %413 = vmatprep.subr.bf16.mxu0 0
    %414 = vmatpush1.bf16.msra.mxu0 %v330
    %415 = vmatprep.subr.bf16.mxu0 0
    %416 = vmatpush1.bf16.msra.mxu0 %v333
    %417 = vmatprep.subr.bf16.mxu0 0
    %418 = vmatpush1.bf16.msra.mxu0 0
    %419 = vmatprep.subr.bf16.mxu0 0
    %420 = vmatpush1.bf16.msra.mxu0 0
    %421 = vmatprep.subr.bf16.mxu0 0
    %422 = vmatpush1.bf16.msra.mxu0 0
    %423 = vmatprep.subr.bf16.mxu0 0
    %424 = vmatpush1.bf16.msra.mxu0 0
    %425 = vmatprep.subr.bf16.mxu0 0
    %426 = vmatpush1.bf16.msra.mxu0 0
    %427 = vmatprep.subr.bf16.mxu0 0
    %428 = vmatpush1.bf16.msra.mxu0 0
    %429 = vmatprep.subr.bf16.mxu0 0
    %430 = vmatpush1.bf16.msra.mxu0 0
    %431 = vmatprep.subr.bf16.mxu0 0
    %432 = vmatpush1.bf16.msra.mxu0 0
    %433 = vmatprep.mubr.bf16.mxu0 0
    %434 = vmatmul.mubr.bf16.gmra.mrb[0].mxu0 %v180
    %v435 = vpop.f32.mrb[0].mxu0
    %v436 = vadd.f32 %v226, %v435
    %v437 = vpop.f32.mrb[0].mxu0
    %v438 = vpop.f32.mrb[0].mxu0
    %v439 = vadd.f32 %v226, %v438
    %v440 = vpop.f32.mrb[0].mxu0
    %441 = vdwg.mxu0
    %v442 = vpack.c.bf16 %v397, %v393
    %444 = vrot.lane.b32.xlu0 %v442, 96
    %v445 = vpop.permute.xlu0 %444
    %446 = vrot.lane.b32.xlu0 %v442, 64
    %v447 = vpop.permute.xlu0 %446
    %448 = vrot.lane.b32.xlu0 %v442, 32
    %v449 = vpop.permute.xlu0 %448
    %v450 = vunpack.c.l.b16 %v442
    %v451 = vunpack.c.h.b16 %v442
    %v452 = vunpack.c.l.b16 %v445
    %v453 = vunpack.c.h.b16 %v445
    %v454 = vunpack.c.l.b16 %v447
    %v455 = vunpack.c.h.b16 %v447
    %v456 = vunpack.c.l.b16 %v449
    %v457 = vunpack.c.h.b16 %v449
    %v458 = vpack.c.b16 %v450, %v450
    %v459 = vpack.c.b16 %v451, %v451
    %v460 = vpack.c.b16 %v452, %v452
    %v461 = vpack.c.b16 %v453, %v453
    %v462 = vpack.c.b16 %v454, %v454
    %v463 = vpack.c.b16 %v455, %v455
    %v464 = vpack.c.b16 %v456, %v456
    %v465 = vpack.c.b16 %v457, %v457
    %v466 = vpack.c.bf16 %v399, %v395
    %468 = vrot.lane.b32.xlu0 %v466, 96
    %v469 = vpop.permute.xlu0 %468
    %470 = vrot.lane.b32.xlu0 %v466, 64
    %v471 = vpop.permute.xlu0 %470
    %472 = vrot.lane.b32.xlu0 %v466, 32
    %v473 = vpop.permute.xlu0 %472
    %v474 = vunpack.c.l.b16 %v466
    %v475 = vunpack.c.h.b16 %v466
    %v476 = vunpack.c.l.b16 %v469
    %v477 = vunpack.c.h.b16 %v469
    %v478 = vunpack.c.l.b16 %v471
    %v479 = vunpack.c.h.b16 %v471
    %v480 = vunpack.c.l.b16 %v473
    %v481 = vunpack.c.h.b16 %v473
    %v482 = vpack.c.b16 %v474, %v474
    %v483 = vpack.c.b16 %v475, %v475
    %v484 = vpack.c.b16 %v476, %v476
    %v485 = vpack.c.b16 %v477, %v477
    %v486 = vpack.c.b16 %v478, %v478
    %v487 = vpack.c.b16 %v479, %v479
    %v488 = vpack.c.b16 %v480, %v480
    %v489 = vpack.c.b16 %v481, %v481
    %v490 = vpack.c.bf16 %v439, %v436
    %492 = vrot.lane.b32.xlu0 %v490, 96
    %v493 = vpop.permute.xlu0 %492
    %494 = vrot.lane.b32.xlu0 %v490, 64
    %v495 = vpop.permute.xlu0 %494
    %496 = vrot.lane.b32.xlu0 %v490, 32
    %v497 = vpop.permute.xlu0 %496
    %v498 = vunpack.c.l.b16 %v490
    %v499 = vunpack.c.h.b16 %v490
    %v500 = vunpack.c.l.b16 %v493
    %v501 = vunpack.c.h.b16 %v493
    %v502 = vunpack.c.l.b16 %v495
    %v503 = vunpack.c.h.b16 %v495
    %v504 = vunpack.c.l.b16 %v497
    %v505 = vunpack.c.h.b16 %v497
    %v506 = vpack.c.b16 %v498, %v498
    %v507 = vpack.c.b16 %v499, %v499
    %v508 = vpack.c.b16 %v500, %v500
    %v509 = vpack.c.b16 %v501, %v501
    %v510 = vpack.c.b16 %v502, %v502
    %v511 = vpack.c.b16 %v503, %v503
    %v512 = vpack.c.b16 %v504, %v504
    %v513 = vpack.c.b16 %v505, %v505
    %vm514 = vcmask 261120
    %v516 = vsel %vm514, %v458, 0
    %v519 = vsel %vm514, %v482, 0
    %521 = vmatprep.subr.bf16.mxu0 0
    %522 = vmatpush1.bf16.xpose.msra.mxu0 %v519
    %523 = vmatprep.subr.bf16.mxu0 0
    %524 = vmatpush1.bf16.xpose.msra.mxu0 0
    %525 = vmatprep.subr.bf16.mxu0 0
    %526 = vmatpush1.bf16.xpose.msra.mxu0 0
    %527 = vmatprep.subr.bf16.mxu0 0
    %528 = vmatpush1.bf16.xpose.msra.mxu0 0
    %529 = vmatprep.subr.bf16.mxu0 0
    %530 = vmatpush1.bf16.xpose.msra.mxu0 0
    %531 = vmatprep.subr.bf16.mxu0 0
    %532 = vmatpush1.bf16.xpose.msra.mxu0 0
    %533 = vmatprep.subr.bf16.mxu0 0
    %534 = vmatpush1.bf16.xpose.msra.mxu0 0
    %535 = vmatprep.subr.bf16.mxu0 0
    %536 = vmatpush1.bf16.xpose.msra.mxu0 0
    %537 = vmatprep.subr.bf16.mxu0 0
    %538 = vmatpush1.bf16.xpose.msra.mxu0 0
    %539 = vmatprep.subr.bf16.mxu0 0
    %540 = vmatpush1.bf16.xpose.msra.mxu0 0
    %541 = vmatprep.subr.bf16.mxu0 0
    %542 = vmatpush1.bf16.xpose.msra.mxu0 0
    %543 = vmatprep.subr.bf16.mxu0 0
    %544 = vmatpush1.bf16.xpose.msra.mxu0 0
    %545 = vmatprep.subr.bf16.mxu0 0
    %546 = vmatpush1.bf16.xpose.msra.mxu0 0
    %547 = vmatprep.subr.bf16.mxu0 0
    %548 = vmatpush1.bf16.xpose.msra.mxu0 0
    %549 = vmatprep.subr.bf16.mxu0 0
    %550 = vmatpush1.bf16.xpose.msra.mxu0 0
    %551 = vmatprep.subr.bf16.mxu0 0
    %552 = vmatpush1.bf16.xpose.msra.mxu0 0
    %553 = vmatprep.mubr.bf16.mxu0 0
    %554 = vmatmul.mubr.bf16.gmra.mrb[0].mxu0 %v516
    %v555 = vpop.f32.mrb[0].mxu0
    %v556 = vadd.f32 0.0, %v555
    %v557 = vpop.f32.mrb[0].mxu0
    %v558 = vpop.f32.mrb[0].mxu0
    %v559 = vpop.f32.mrb[0].mxu0
    %560 = vdwg.mxu0
    %v562 = vsel %vm514, %v459, 0
    %v565 = vsel %vm514, %v483, 0
    %567 = vmatprep.subr.bf16.mxu0 0
    %568 = vmatpush1.bf16.xpose.msra.mxu0 %v565
    %569 = vmatprep.subr.bf16.mxu0 0
    %570 = vmatpush1.bf16.xpose.msra.mxu0 0
    %571 = vmatprep.subr.bf16.mxu0 0
    %572 = vmatpush1.bf16.xpose.msra.mxu0 0
    %573 = vmatprep.subr.bf16.mxu0 0
    %574 = vmatpush1.bf16.xpose.msra.mxu0 0
    %575 = vmatprep.subr.bf16.mxu0 0
    %576 = vmatpush1.bf16.xpose.msra.mxu0 0
    %577 = vmatprep.subr.bf16.mxu0 0
    %578 = vmatpush1.bf16.xpose.msra.mxu0 0
    %579 = vmatprep.subr.bf16.mxu0 0
    %580 = vmatpush1.bf16.xpose.msra.mxu0 0
    %581 = vmatprep.subr.bf16.mxu0 0
    %582 = vmatpush1.bf16.xpose.msra.mxu0 0
    %583 = vmatprep.subr.bf16.mxu0 0
    %584 = vmatpush1.bf16.xpose.msra.mxu0 0
    %585 = vmatprep.subr.bf16.mxu0 0
    %586 = vmatpush1.bf16.xpose.msra.mxu0 0
    %587 = vmatprep.subr.bf16.mxu0 0
    %588 = vmatpush1.bf16.xpose.msra.mxu0 0
    %589 = vmatprep.subr.bf16.mxu0 0
    %590 = vmatpush1.bf16.xpose.msra.mxu0 0
    %591 = vmatprep.subr.bf16.mxu0 0
    %592 = vmatpush1.bf16.xpose.msra.mxu0 0
    %593 = vmatprep.subr.bf16.mxu0 0
    %594 = vmatpush1.bf16.xpose.msra.mxu0 0
    %595 = vmatprep.subr.bf16.mxu0 0
    %596 = vmatpush1.bf16.xpose.msra.mxu0 0
    %597 = vmatprep.subr.bf16.mxu0 0
    %598 = vmatpush1.bf16.xpose.msra.mxu0 0
    %599 = vmatprep.mubr.bf16.mxu0 0
    %600 = vmatmul.mubr.bf16.gmra.mrb[0].mxu0 %v562
    %v601 = vpop.f32.mrb[0].mxu0
    %v602 = vadd.f32 0.0, %v601
    %v603 = vpop.f32.mrb[0].mxu0
    %v604 = vpop.f32.mrb[0].mxu0
    %v605 = vpop.f32.mrb[0].mxu0
    %606 = vdwg.mxu0
    %v608 = vsel %vm514, %v460, 0
    %v611 = vsel %vm514, %v484, 0
    %613 = vmatprep.subr.bf16.mxu0 0
    %614 = vmatpush1.bf16.xpose.msra.mxu0 %v611
    %615 = vmatprep.subr.bf16.mxu0 0
    %616 = vmatpush1.bf16.xpose.msra.mxu0 0
    %617 = vmatprep.subr.bf16.mxu0 0
    %618 = vmatpush1.bf16.xpose.msra.mxu0 0
    %619 = vmatprep.subr.bf16.mxu0 0
    %620 = vmatpush1.bf16.xpose.msra.mxu0 0
    %621 = vmatprep.subr.bf16.mxu0 0
    %622 = vmatpush1.bf16.xpose.msra.mxu0 0
    %623 = vmatprep.subr.bf16.mxu0 0
    %624 = vmatpush1.bf16.xpose.msra.mxu0 0
    %625 = vmatprep.subr.bf16.mxu0 0
    %626 = vmatpush1.bf16.xpose.msra.mxu0 0
    %627 = vmatprep.subr.bf16.mxu0 0
    %628 = vmatpush1.bf16.xpose.msra.mxu0 0
    %629 = vmatprep.subr.bf16.mxu0 0
    %630 = vmatpush1.bf16.xpose.msra.mxu0 0
    %631 = vmatprep.subr.bf16.mxu0 0
    %632 = vmatpush1.bf16.xpose.msra.mxu0 0
    %633 = vmatprep.subr.bf16.mxu0 0
    %634 = vmatpush1.bf16.xpose.msra.mxu0 0
    %635 = vmatprep.subr.bf16.mxu0 0
    %636 = vmatpush1.bf16.xpose.msra.mxu0 0
    %637 = vmatprep.subr.bf16.mxu0 0
    %638 = vmatpush1.bf16.xpose.msra.mxu0 0
    %639 = vmatprep.subr.bf16.mxu0 0
    %640 = vmatpush1.bf16.xpose.msra.mxu0 0
    %641 = vmatprep.subr.bf16.mxu0 0
    %642 = vmatpush1.bf16.xpose.msra.mxu0 0
    %643 = vmatprep.subr.bf16.mxu0 0
    %644 = vmatpush1.bf16.xpose.msra.mxu0 0
    %645 = vmatprep.mubr.bf16.mxu0 0
    %646 = vmatmul.mubr.bf16.gmra.mrb[0].mxu0 %v608
    %v647 = vpop.f32.mrb[0].mxu0
    %v648 = vadd.f32 0.0, %v647
    %v649 = vpop.f32.mrb[0].mxu0
    %v650 = vpop.f32.mrb[0].mxu0
    %v651 = vpop.f32.mrb[0].mxu0
    %652 = vdwg.mxu0
    %v654 = vsel %vm514, %v461, 0
    %v657 = vsel %vm514, %v485, 0
    %659 = vmatprep.subr.bf16.mxu0 0
    %660 = vmatpush1.bf16.xpose.msra.mxu0 %v657
    %661 = vmatprep.subr.bf16.mxu0 0
    %662 = vmatpush1.bf16.xpose.msra.mxu0 0
    %663 = vmatprep.subr.bf16.mxu0 0
    %664 = vmatpush1.bf16.xpose.msra.mxu0 0
    %665 = vmatprep.subr.bf16.mxu0 0
    %666 = vmatpush1.bf16.xpose.msra.mxu0 0
    %667 = vmatprep.subr.bf16.mxu0 0
    %668 = vmatpush1.bf16.xpose.msra.mxu0 0
    %669 = vmatprep.subr.bf16.mxu0 0
    %670 = vmatpush1.bf16.xpose.msra.mxu0 0
    %671 = vmatprep.subr.bf16.mxu0 0
    %672 = vmatpush1.bf16.xpose.msra.mxu0 0
    %673 = vmatprep.subr.bf16.mxu0 0
    %674 = vmatpush1.bf16.xpose.msra.mxu0 0
    %675 = vmatprep.subr.bf16.mxu0 0
    %676 = vmatpush1.bf16.xpose.msra.mxu0 0
    %677 = vmatprep.subr.bf16.mxu0 0
    %678 = vmatpush1.bf16.xpose.msra.mxu0 0
    %679 = vmatprep.subr.bf16.mxu0 0
    %680 = vmatpush1.bf16.xpose.msra.mxu0 0
    %681 = vmatprep.subr.bf16.mxu0 0
    %682 = vmatpush1.bf16.xpose.msra.mxu0 0
    %683 = vmatprep.subr.bf16.mxu0 0
    %684 = vmatpush1.bf16.xpose.msra.mxu0 0
    %685 = vmatprep.subr.bf16.mxu0 0
    %686 = vmatpush1.bf16.xpose.msra.mxu0 0
    %687 = vmatprep.subr.bf16.mxu0 0
    %688 = vmatpush1.bf16.xpose.msra.mxu0 0
    %689 = vmatprep.subr.bf16.mxu0 0
    %690 = vmatpush1.bf16.xpose.msra.mxu0 0
    %691 = vmatprep.mubr.bf16.mxu0 0
    %692 = vmatmul.mubr.bf16.gmra.mrb[0].mxu0 %v654
    %v693 = vpop.f32.mrb[0].mxu0
    %v694 = vadd.f32 0.0, %v693
    %v695 = vpop.f32.mrb[0].mxu0
    %v696 = vpop.f32.mrb[0].mxu0
    %v697 = vpop.f32.mrb[0].mxu0
    %698 = vdwg.mxu0
    %v700 = vsel %vm514, %v462, 0
    %v703 = vsel %vm514, %v486, 0
    %705 = vmatprep.subr.bf16.mxu0 0
    %706 = vmatpush1.bf16.xpose.msra.mxu0 %v703
    %707 = vmatprep.subr.bf16.mxu0 0
    %708 = vmatpush1.bf16.xpose.msra.mxu0 0
    %709 = vmatprep.subr.bf16.mxu0 0
    %710 = vmatpush1.bf16.xpose.msra.mxu0 0
    %711 = vmatprep.subr.bf16.mxu0 0
    %712 = vmatpush1.bf16.xpose.msra.mxu0 0
    %713 = vmatprep.subr.bf16.mxu0 0
    %714 = vmatpush1.bf16.xpose.msra.mxu0 0
    %715 = vmatprep.subr.bf16.mxu0 0
    %716 = vmatpush1.bf16.xpose.msra.mxu0 0
    %717 = vmatprep.subr.bf16.mxu0 0
    %718 = vmatpush1.bf16.xpose.msra.mxu0 0
    %719 = vmatprep.subr.bf16.mxu0 0
    %720 = vmatpush1.bf16.xpose.msra.mxu0 0
    %721 = vmatprep.subr.bf16.mxu0 0
    %722 = vmatpush1.bf16.xpose.msra.mxu0 0
    %723 = vmatprep.subr.bf16.mxu0 0
    %724 = vmatpush1.bf16.xpose.msra.mxu0 0
    %725 = vmatprep.subr.bf16.mxu0 0
    %726 = vmatpush1.bf16.xpose.msra.mxu0 0
    %727 = vmatprep.subr.bf16.mxu0 0
    %728 = vmatpush1.bf16.xpose.msra.mxu0 0
    %729 = vmatprep.subr.bf16.mxu0 0
    %730 = vmatpush1.bf16.xpose.msra.mxu0 0
    %731 = vmatprep.subr.bf16.mxu0 0
    %732 = vmatpush1.bf16.xpose.msra.mxu0 0
    %733 = vmatprep.subr.bf16.mxu0 0
    %734 = vmatpush1.bf16.xpose.msra.mxu0 0
    %735 = vmatprep.subr.bf16.mxu0 0
    %736 = vmatpush1.bf16.xpose.msra.mxu0 0
    %737 = vmatprep.mubr.bf16.mxu0 0
    %738 = vmatmul.mubr.bf16.gmra.mrb[0].mxu0 %v700
    %v739 = vpop.f32.mrb[0].mxu0
    %v740 = vadd.f32 0.0, %v739
    %v741 = vpop.f32.mrb[0].mxu0
    %v742 = vpop.f32.mrb[0].mxu0
    %v743 = vpop.f32.mrb[0].mxu0
    %744 = vdwg.mxu0
    %v746 = vsel %vm514, %v463, 0
    %v749 = vsel %vm514, %v487, 0
    %751 = vmatprep.subr.bf16.mxu0 0
    %752 = vmatpush1.bf16.xpose.msra.mxu0 %v749
    %753 = vmatprep.subr.bf16.mxu0 0
    %754 = vmatpush1.bf16.xpose.msra.mxu0 0
    %755 = vmatprep.subr.bf16.mxu0 0
    %756 = vmatpush1.bf16.xpose.msra.mxu0 0
    %757 = vmatprep.subr.bf16.mxu0 0
    %758 = vmatpush1.bf16.xpose.msra.mxu0 0
    %759 = vmatprep.subr.bf16.mxu0 0
    %760 = vmatpush1.bf16.xpose.msra.mxu0 0
    %761 = vmatprep.subr.bf16.mxu0 0
    %762 = vmatpush1.bf16.xpose.msra.mxu0 0
    %763 = vmatprep.subr.bf16.mxu0 0
    %764 = vmatpush1.bf16.xpose.msra.mxu0 0
    %765 = vmatprep.subr.bf16.mxu0 0
    %766 = vmatpush1.bf16.xpose.msra.mxu0 0
    %767 = vmatprep.subr.bf16.mxu0 0
    %768 = vmatpush1.bf16.xpose.msra.mxu0 0
    %769 = vmatprep.subr.bf16.mxu0 0
    %770 = vmatpush1.bf16.xpose.msra.mxu0 0
    %771 = vmatprep.subr.bf16.mxu0 0
    %772 = vmatpush1.bf16.xpose.msra.mxu0 0
    %773 = vmatprep.subr.bf16.mxu0 0
    %774 = vmatpush1.bf16.xpose.msra.mxu0 0
    %775 = vmatprep.subr.bf16.mxu0 0
    %776 = vmatpush1.bf16.xpose.msra.mxu0 0
    %777 = vmatprep.subr.bf16.mxu0 0
    %778 = vmatpush1.bf16.xpose.msra.mxu0 0
    %779 = vmatprep.subr.bf16.mxu0 0
    %780 = vmatpush1.bf16.xpose.msra.mxu0 0
    %781 = vmatprep.subr.bf16.mxu0 0
    %782 = vmatpush1.bf16.xpose.msra.mxu0 0
    %783 = vmatprep.mubr.bf16.mxu0 0
    %784 = vmatmul.mubr.bf16.gmra.mrb[0].mxu0 %v746
    %v785 = vpop.f32.mrb[0].mxu0
    %v786 = vadd.f32 0.0, %v785
    %v787 = vpop.f32.mrb[0].mxu0
    %v788 = vpop.f32.mrb[0].mxu0
    %v789 = vpop.f32.mrb[0].mxu0
    %790 = vdwg.mxu0
    %v792 = vsel %vm514, %v464, 0
    %v795 = vsel %vm514, %v488, 0
    %797 = vmatprep.subr.bf16.mxu0 0
    %798 = vmatpush1.bf16.xpose.msra.mxu0 %v795
    %799 = vmatprep.subr.bf16.mxu0 0
    %800 = vmatpush1.bf16.xpose.msra.mxu0 0
    %801 = vmatprep.subr.bf16.mxu0 0
    %802 = vmatpush1.bf16.xpose.msra.mxu0 0
    %803 = vmatprep.subr.bf16.mxu0 0
    %804 = vmatpush1.bf16.xpose.msra.mxu0 0
    %805 = vmatprep.subr.bf16.mxu0 0
    %806 = vmatpush1.bf16.xpose.msra.mxu0 0
    %807 = vmatprep.subr.bf16.mxu0 0
    %808 = vmatpush1.bf16.xpose.msra.mxu0 0
    %809 = vmatprep.subr.bf16.mxu0 0
    %810 = vmatpush1.bf16.xpose.msra.mxu0 0
    %811 = vmatprep.subr.bf16.mxu0 0
    %812 = vmatpush1.bf16.xpose.msra.mxu0 0
    %813 = vmatprep.subr.bf16.mxu0 0
    %814 = vmatpush1.bf16.xpose.msra.mxu0 0
    %815 = vmatprep.subr.bf16.mxu0 0
    %816 = vmatpush1.bf16.xpose.msra.mxu0 0
    %817 = vmatprep.subr.bf16.mxu0 0
    %818 = vmatpush1.bf16.xpose.msra.mxu0 0
    %819 = vmatprep.subr.bf16.mxu0 0
    %820 = vmatpush1.bf16.xpose.msra.mxu0 0
    %821 = vmatprep.subr.bf16.mxu0 0
    %822 = vmatpush1.bf16.xpose.msra.mxu0 0
    %823 = vmatprep.subr.bf16.mxu0 0
    %824 = vmatpush1.bf16.xpose.msra.mxu0 0
    %825 = vmatprep.subr.bf16.mxu0 0
    %826 = vmatpush1.bf16.xpose.msra.mxu0 0
    %827 = vmatprep.subr.bf16.mxu0 0
    %828 = vmatpush1.bf16.xpose.msra.mxu0 0
    %829 = vmatprep.mubr.bf16.mxu0 0
    %830 = vmatmul.mubr.bf16.gmra.mrb[0].mxu0 %v792
    %v831 = vpop.f32.mrb[0].mxu0
    %v832 = vadd.f32 0.0, %v831
    %v833 = vpop.f32.mrb[0].mxu0
    %v834 = vpop.f32.mrb[0].mxu0
    %v835 = vpop.f32.mrb[0].mxu0
    %836 = vdwg.mxu0
    %v838 = vsel %vm514, %v465, 0
    %v841 = vsel %vm514, %v489, 0
    %843 = vmatprep.subr.bf16.mxu0 0
    %844 = vmatpush1.bf16.xpose.msra.mxu0 %v841
    %845 = vmatprep.subr.bf16.mxu0 0
    %846 = vmatpush1.bf16.xpose.msra.mxu0 0
    %847 = vmatprep.subr.bf16.mxu0 0
    %848 = vmatpush1.bf16.xpose.msra.mxu0 0
    %849 = vmatprep.subr.bf16.mxu0 0
    %850 = vmatpush1.bf16.xpose.msra.mxu0 0
    %851 = vmatprep.subr.bf16.mxu0 0
    %852 = vmatpush1.bf16.xpose.msra.mxu0 0
    %853 = vmatprep.subr.bf16.mxu0 0
    %854 = vmatpush1.bf16.xpose.msra.mxu0 0
    %855 = vmatprep.subr.bf16.mxu0 0
    %856 = vmatpush1.bf16.xpose.msra.mxu0 0
    %857 = vmatprep.subr.bf16.mxu0 0
    %858 = vmatpush1.bf16.xpose.msra.mxu0 0
    %859 = vmatprep.subr.bf16.mxu0 0
    %860 = vmatpush1.bf16.xpose.msra.mxu0 0
    %861 = vmatprep.subr.bf16.mxu0 0
    %862 = vmatpush1.bf16.xpose.msra.mxu0 0
    %863 = vmatprep.subr.bf16.mxu0 0
    %864 = vmatpush1.bf16.xpose.msra.mxu0 0
    %865 = vmatprep.subr.bf16.mxu0 0
    %866 = vmatpush1.bf16.xpose.msra.mxu0 0
    %867 = vmatprep.subr.bf16.mxu0 0
    %868 = vmatpush1.bf16.xpose.msra.mxu0 0
    %869 = vmatprep.subr.bf16.mxu0 0
    %870 = vmatpush1.bf16.xpose.msra.mxu0 0
    %871 = vmatprep.subr.bf16.mxu0 0
    %872 = vmatpush1.bf16.xpose.msra.mxu0 0
    %873 = vmatprep.subr.bf16.mxu0 0
    %874 = vmatpush1.bf16.xpose.msra.mxu0 0
    %875 = vmatprep.mubr.bf16.mxu0 0
    %876 = vmatmul.mubr.bf16.gmra.mrb[0].mxu0 %v838
    %v877 = vpop.f32.mrb[0].mxu0
    %v878 = vadd.f32 0.0, %v877
    %v879 = vpop.f32.mrb[0].mxu0
    %v880 = vpop.f32.mrb[0].mxu0
    %v881 = vpop.f32.mrb[0].mxu0
    %882 = vdwg.mxu0
    %v883 = vmul.f32 %v556, 0.17677669
    %v884 = vmul.f32 %v602, 0.17677669
    %v885 = vmul.f32 %v648, 0.17677669
    %v886 = vmul.f32 %v694, 0.17677669
    %v887 = vmul.f32 %v740, 0.17677669
    %v888 = vmul.f32 %v786, 0.17677669
    %v889 = vmul.f32 %v832, 0.17677669
    %v890 = vmul.f32 %v878, 0.17677669
    %vm891 = vcmask 64512
    %v892 = vsel %vm891, %v883, -inf
    %893 = vmax.xlane.f32.xlu0 %v892
    %v894 = vpop.xlane.xlu0 %893
    %v895 = vsel %vm891, %v884, -inf
    %896 = vmax.xlane.f32.xlu0 %v895
    %v897 = vpop.xlane.xlu0 %896
    %v898 = vsel %vm891, %v885, -inf
    %899 = vmax.xlane.f32.xlu0 %v898
    %v900 = vpop.xlane.xlu0 %899
    %v901 = vsel %vm891, %v886, -inf
    %902 = vmax.xlane.f32.xlu0 %v901
    %v903 = vpop.xlane.xlu0 %902
    %v904 = vsel %vm891, %v887, -inf
    %905 = vmax.xlane.f32.xlu0 %v904
    %v906 = vpop.xlane.xlu0 %905
    %v907 = vsel %vm891, %v888, -inf
    %908 = vmax.xlane.f32.xlu0 %v907
    %v909 = vpop.xlane.xlu0 %908
    %v910 = vsel %vm891, %v889, -inf
    %911 = vmax.xlane.f32.xlu0 %v910
    %v912 = vpop.xlane.xlu0 %911
    %v913 = vsel %vm891, %v890, -inf
    %914 = vmax.xlane.f32.xlu0 %v913
    %v915 = vpop.xlane.xlu0 %914
    %v916 = vmax.f32 %v894, -1e+30
    %v917 = vmax.f32 %v897, -1e+30
    %v918 = vmax.f32 %v900, -1e+30
    %v919 = vmax.f32 %v903, -1e+30
    %v920 = vmax.f32 %v906, -1e+30
    %v921 = vmax.f32 %v909, -1e+30
    %v922 = vmax.f32 %v912, -1e+30
    %v923 = vmax.f32 %v915, -1e+30
    %v924 = vsub.f32 %v883, %v916
    %v925 = vsub.f32 %v884, %v917
    %v926 = vsub.f32 %v885, %v918
    %v927 = vsub.f32 %v886, %v919
    %v928 = vsub.f32 %v887, %v920
    %v929 = vsub.f32 %v888, %v921
    %v930 = vsub.f32 %v889, %v922
    %v931 = vsub.f32 %v890, %v923
    %v932 = vmul.f32 %v924, 1.442695
    %v933 = vpow.pop %v932
    %v934 = vmul.f32 %v925, 1.442695
    %v935 = vpow.pop %v934
    %v936 = vmul.f32 %v926, 1.442695
    %v937 = vpow.pop %v936
    %v938 = vmul.f32 %v927, 1.442695
    %v939 = vpow.pop %v938
    %v940 = vmul.f32 %v928, 1.442695
    %v941 = vpow.pop %v940
    %v942 = vmul.f32 %v929, 1.442695
    %v943 = vpow.pop %v942
    %v944 = vmul.f32 %v930, 1.442695
    %v945 = vpow.pop %v944
    %v946 = vmul.f32 %v931, 1.442695
    %v947 = vpow.pop %v946
    %v948 = vsel %vm891, %v933, 0.0
    %949 = vadd.xlane.f32.xlu0 %v948
    %v950 = vpop.xlane.xlu0 %949
    %v951 = vsel %vm891, %v935, 0.0
    %952 = vadd.xlane.f32.xlu0 %v951
    %v953 = vpop.xlane.xlu0 %952
    %v954 = vsel %vm891, %v937, 0.0
    %955 = vadd.xlane.f32.xlu0 %v954
    %v956 = vpop.xlane.xlu0 %955
    %v957 = vsel %vm891, %v939, 0.0
    %958 = vadd.xlane.f32.xlu0 %v957
    %v959 = vpop.xlane.xlu0 %958
    %v960 = vsel %vm891, %v941, 0.0
    %961 = vadd.xlane.f32.xlu0 %v960
    %v962 = vpop.xlane.xlu0 %961
    %v963 = vsel %vm891, %v943, 0.0
    %964 = vadd.xlane.f32.xlu0 %v963
    %v965 = vpop.xlane.xlu0 %964
    %v966 = vsel %vm891, %v945, 0.0
    %967 = vadd.xlane.f32.xlu0 %v966
    %v968 = vpop.xlane.xlu0 %967
    %v969 = vsel %vm891, %v947, 0.0
    %970 = vadd.xlane.f32.xlu0 %v969
    %v971 = vpop.xlane.xlu0 %970
    %v972 = vmax.f32 %v950, 1e-30
    %v973 = vmax.f32 %v953, 1e-30
    %v974 = vmax.f32 %v956, 1e-30
    %v975 = vmax.f32 %v959, 1e-30
    %v976 = vmax.f32 %v962, 1e-30
    %v977 = vmax.f32 %v965, 1e-30
    %v978 = vmax.f32 %v968, 1e-30
    %v979 = vmax.f32 %v971, 1e-30
    %v980 = vrcp.pop %v972
    %v981 = vmul.f32 %v933, %v980
    %v982 = vrcp.pop %v973
    %v983 = vmul.f32 %v935, %v982
    %v984 = vrcp.pop %v974
    %v985 = vmul.f32 %v937, %v984
    %v986 = vrcp.pop %v975
    %v987 = vmul.f32 %v939, %v986
    %v988 = vrcp.pop %v976
    %v989 = vmul.f32 %v941, %v988
    %v990 = vrcp.pop %v977
    %v991 = vmul.f32 %v943, %v990
    %v992 = vrcp.pop %v978
    %v993 = vmul.f32 %v945, %v992
    %v994 = vrcp.pop %v979
    %v995 = vmul.f32 %v947, %v994
    %v996 = vpack.c.bf16 %v981, %v981
    %v997 = vpack.c.bf16 %v983, %v983
    %v998 = vpack.c.bf16 %v985, %v985
    %v999 = vpack.c.bf16 %v987, %v987
    %v1000 = vpack.c.bf16 %v989, %v989
    %v1001 = vpack.c.bf16 %v991, %v991
    %v1002 = vpack.c.bf16 %v993, %v993
    %v1003 = vpack.c.bf16 %v995, %v995
    %v1005 = vsel %vm891, %v996, 0
    %vm1007 = vcmask 1043456
    %v1009 = vsel %vm1007, %v506, 0
    %1011 = vmatprep.subr.bf16.mxu0 0
    %1012 = vmatpush1.bf16.msra.mxu0 %v1009
    %1013 = vmatprep.subr.bf16.mxu0 0
    %1014 = vmatpush1.bf16.msra.mxu0 0
    %1015 = vmatprep.subr.bf16.mxu0 0
    %1016 = vmatpush1.bf16.msra.mxu0 0
    %1017 = vmatprep.subr.bf16.mxu0 0
    %1018 = vmatpush1.bf16.msra.mxu0 0
    %1019 = vmatprep.subr.bf16.mxu0 0
    %1020 = vmatpush1.bf16.msra.mxu0 0
    %1021 = vmatprep.subr.bf16.mxu0 0
    %1022 = vmatpush1.bf16.msra.mxu0 0
    %1023 = vmatprep.subr.bf16.mxu0 0
    %1024 = vmatpush1.bf16.msra.mxu0 0
    %1025 = vmatprep.subr.bf16.mxu0 0
    %1026 = vmatpush1.bf16.msra.mxu0 0
    %1027 = vmatprep.subr.bf16.mxu0 0
    %1028 = vmatpush1.bf16.msra.mxu0 0
    %1029 = vmatprep.subr.bf16.mxu0 0
    %1030 = vmatpush1.bf16.msra.mxu0 0
    %1031 = vmatprep.subr.bf16.mxu0 0
    %1032 = vmatpush1.bf16.msra.mxu0 0
    %1033 = vmatprep.subr.bf16.mxu0 0
    %1034 = vmatpush1.bf16.msra.mxu0 0
    %1035 = vmatprep.subr.bf16.mxu0 0
    %1036 = vmatpush1.bf16.msra.mxu0 0
    %1037 = vmatprep.subr.bf16.mxu0 0
    %1038 = vmatpush1.bf16.msra.mxu0 0
    %1039 = vmatprep.subr.bf16.mxu0 0
    %1040 = vmatpush1.bf16.msra.mxu0 0
    %1041 = vmatprep.subr.bf16.mxu0 0
    %1042 = vmatpush1.bf16.msra.mxu0 0
    %1043 = vmatprep.mubr.bf16.mxu0 0
    %1044 = vmatmul.mubr.bf16.gmra.mrb[0].mxu0 %v1005
    %v1045 = vpop.f32.mrb[0].mxu0
    %v1046 = vadd.f32 0.0, %v1045
    %v1047 = vpop.f32.mrb[0].mxu0
    %v1048 = vpop.f32.mrb[0].mxu0
    %v1049 = vpop.f32.mrb[0].mxu0
    %1050 = vdwg.mxu0
    %v1052 = vsel %vm891, %v997, 0
    %v1055 = vsel %vm1007, %v507, 0
    %1057 = vmatprep.subr.bf16.mxu0 0
    %1058 = vmatpush1.bf16.msra.mxu0 %v1055
    %1059 = vmatprep.subr.bf16.mxu0 0
    %1060 = vmatpush1.bf16.msra.mxu0 0
    %1061 = vmatprep.subr.bf16.mxu0 0
    %1062 = vmatpush1.bf16.msra.mxu0 0
    %1063 = vmatprep.subr.bf16.mxu0 0
    %1064 = vmatpush1.bf16.msra.mxu0 0
    %1065 = vmatprep.subr.bf16.mxu0 0
    %1066 = vmatpush1.bf16.msra.mxu0 0
    %1067 = vmatprep.subr.bf16.mxu0 0
    %1068 = vmatpush1.bf16.msra.mxu0 0
    %1069 = vmatprep.subr.bf16.mxu0 0
    %1070 = vmatpush1.bf16.msra.mxu0 0
    %1071 = vmatprep.subr.bf16.mxu0 0
    %1072 = vmatpush1.bf16.msra.mxu0 0
    %1073 = vmatprep.subr.bf16.mxu0 0
    %1074 = vmatpush1.bf16.msra.mxu0 0
    %1075 = vmatprep.subr.bf16.mxu0 0
    %1076 = vmatpush1.bf16.msra.mxu0 0
    %1077 = vmatprep.subr.bf16.mxu0 0
    %1078 = vmatpush1.bf16.msra.mxu0 0
    %1079 = vmatprep.subr.bf16.mxu0 0
    %1080 = vmatpush1.bf16.msra.mxu0 0
    %1081 = vmatprep.subr.bf16.mxu0 0
    %1082 = vmatpush1.bf16.msra.mxu0 0
    %1083 = vmatprep.subr.bf16.mxu0 0
    %1084 = vmatpush1.bf16.msra.mxu0 0
    %1085 = vmatprep.subr.bf16.mxu0 0
    %1086 = vmatpush1.bf16.msra.mxu0 0
    %1087 = vmatprep.subr.bf16.mxu0 0
    %1088 = vmatpush1.bf16.msra.mxu0 0
    %1089 = vmatprep.mubr.bf16.mxu0 0
    %1090 = vmatmul.mubr.bf16.gmra.mrb[0].mxu0 %v1052
    %v1091 = vpop.f32.mrb[0].mxu0
    %v1092 = vadd.f32 0.0, %v1091
    %v1093 = vpop.f32.mrb[0].mxu0
    %v1094 = vpop.f32.mrb[0].mxu0
    %v1095 = vpop.f32.mrb[0].mxu0
    %1096 = vdwg.mxu0
    %v1098 = vsel %vm891, %v998, 0
    %v1101 = vsel %vm1007, %v508, 0
    %1103 = vmatprep.subr.bf16.mxu0 0
    %1104 = vmatpush1.bf16.msra.mxu0 %v1101
    %1105 = vmatprep.subr.bf16.mxu0 0
    %1106 = vmatpush1.bf16.msra.mxu0 0
    %1107 = vmatprep.subr.bf16.mxu0 0
    %1108 = vmatpush1.bf16.msra.mxu0 0
    %1109 = vmatprep.subr.bf16.mxu0 0
    %1110 = vmatpush1.bf16.msra.mxu0 0
    %1111 = vmatprep.subr.bf16.mxu0 0
    %1112 = vmatpush1.bf16.msra.mxu0 0
    %1113 = vmatprep.subr.bf16.mxu0 0
    %1114 = vmatpush1.bf16.msra.mxu0 0
    %1115 = vmatprep.subr.bf16.mxu0 0
    %1116 = vmatpush1.bf16.msra.mxu0 0
    %1117 = vmatprep.subr.bf16.mxu0 0
    %1118 = vmatpush1.bf16.msra.mxu0 0
    %1119 = vmatprep.subr.bf16.mxu0 0
    %1120 = vmatpush1.bf16.msra.mxu0 0
    %1121 = vmatprep.subr.bf16.mxu0 0
    %1122 = vmatpush1.bf16.msra.mxu0 0
    %1123 = vmatprep.subr.bf16.mxu0 0
    %1124 = vmatpush1.bf16.msra.mxu0 0
    %1125 = vmatprep.subr.bf16.mxu0 0
    %1126 = vmatpush1.bf16.msra.mxu0 0
    %1127 = vmatprep.subr.bf16.mxu0 0
    %1128 = vmatpush1.bf16.msra.mxu0 0
    %1129 = vmatprep.subr.bf16.mxu0 0
    %1130 = vmatpush1.bf16.msra.mxu0 0
    %1131 = vmatprep.subr.bf16.mxu0 0
    %1132 = vmatpush1.bf16.msra.mxu0 0
    %1133 = vmatprep.subr.bf16.mxu0 0
    %1134 = vmatpush1.bf16.msra.mxu0 0
    %1135 = vmatprep.mubr.bf16.mxu0 0
    %1136 = vmatmul.mubr.bf16.gmra.mrb[0].mxu0 %v1098
    %v1137 = vpop.f32.mrb[0].mxu0
    %v1138 = vadd.f32 0.0, %v1137
    %v1139 = vpop.f32.mrb[0].mxu0
    %v1140 = vpop.f32.mrb[0].mxu0
    %v1141 = vpop.f32.mrb[0].mxu0
    %1142 = vdwg.mxu0
    %v1144 = vsel %vm891, %v999, 0
    %v1147 = vsel %vm1007, %v509, 0
    %1149 = vmatprep.subr.bf16.mxu0 0
    %1150 = vmatpush1.bf16.msra.mxu0 %v1147
    %1151 = vmatprep.subr.bf16.mxu0 0
    %1152 = vmatpush1.bf16.msra.mxu0 0
    %1153 = vmatprep.subr.bf16.mxu0 0
    %1154 = vmatpush1.bf16.msra.mxu0 0
    %1155 = vmatprep.subr.bf16.mxu0 0
    %1156 = vmatpush1.bf16.msra.mxu0 0
    %1157 = vmatprep.subr.bf16.mxu0 0
    %1158 = vmatpush1.bf16.msra.mxu0 0
    %1159 = vmatprep.subr.bf16.mxu0 0
    %1160 = vmatpush1.bf16.msra.mxu0 0
    %1161 = vmatprep.subr.bf16.mxu0 0
    %1162 = vmatpush1.bf16.msra.mxu0 0
    %1163 = vmatprep.subr.bf16.mxu0 0
    %1164 = vmatpush1.bf16.msra.mxu0 0
    %1165 = vmatprep.subr.bf16.mxu0 0
    %1166 = vmatpush1.bf16.msra.mxu0 0
    %1167 = vmatprep.subr.bf16.mxu0 0
    %1168 = vmatpush1.bf16.msra.mxu0 0
    %1169 = vmatprep.subr.bf16.mxu0 0
    %1170 = vmatpush1.bf16.msra.mxu0 0
    %1171 = vmatprep.subr.bf16.mxu0 0
    %1172 = vmatpush1.bf16.msra.mxu0 0
    %1173 = vmatprep.subr.bf16.mxu0 0
    %1174 = vmatpush1.bf16.msra.mxu0 0
    %1175 = vmatprep.subr.bf16.mxu0 0
    %1176 = vmatpush1.bf16.msra.mxu0 0
    %1177 = vmatprep.subr.bf16.mxu0 0
    %1178 = vmatpush1.bf16.msra.mxu0 0
    %1179 = vmatprep.subr.bf16.mxu0 0
    %1180 = vmatpush1.bf16.msra.mxu0 0
    %1181 = vmatprep.mubr.bf16.mxu0 0
    %1182 = vmatmul.mubr.bf16.gmra.mrb[0].mxu0 %v1144
    %v1183 = vpop.f32.mrb[0].mxu0
    %v1184 = vadd.f32 0.0, %v1183
    %v1185 = vpop.f32.mrb[0].mxu0
    %v1186 = vpop.f32.mrb[0].mxu0
    %v1187 = vpop.f32.mrb[0].mxu0
    %1188 = vdwg.mxu0
    %v1190 = vsel %vm891, %v1000, 0
    %v1193 = vsel %vm1007, %v510, 0
    %1195 = vmatprep.subr.bf16.mxu0 0
    %1196 = vmatpush1.bf16.msra.mxu0 %v1193
    %1197 = vmatprep.subr.bf16.mxu0 0
    %1198 = vmatpush1.bf16.msra.mxu0 0
    %1199 = vmatprep.subr.bf16.mxu0 0
    %1200 = vmatpush1.bf16.msra.mxu0 0
    %1201 = vmatprep.subr.bf16.mxu0 0
    %1202 = vmatpush1.bf16.msra.mxu0 0
    %1203 = vmatprep.subr.bf16.mxu0 0
    %1204 = vmatpush1.bf16.msra.mxu0 0
    %1205 = vmatprep.subr.bf16.mxu0 0
    %1206 = vmatpush1.bf16.msra.mxu0 0
    %1207 = vmatprep.subr.bf16.mxu0 0
    %1208 = vmatpush1.bf16.msra.mxu0 0
    %1209 = vmatprep.subr.bf16.mxu0 0
    %1210 = vmatpush1.bf16.msra.mxu0 0
    %1211 = vmatprep.subr.bf16.mxu0 0
    %1212 = vmatpush1.bf16.msra.mxu0 0
    %1213 = vmatprep.subr.bf16.mxu0 0
    %1214 = vmatpush1.bf16.msra.mxu0 0
    %1215 = vmatprep.subr.bf16.mxu0 0
    %1216 = vmatpush1.bf16.msra.mxu0 0
    %1217 = vmatprep.subr.bf16.mxu0 0
    %1218 = vmatpush1.bf16.msra.mxu0 0
    %1219 = vmatprep.subr.bf16.mxu0 0
    %1220 = vmatpush1.bf16.msra.mxu0 0
    %1221 = vmatprep.subr.bf16.mxu0 0
    %1222 = vmatpush1.bf16.msra.mxu0 0
    %1223 = vmatprep.subr.bf16.mxu0 0
    %1224 = vmatpush1.bf16.msra.mxu0 0
    %1225 = vmatprep.subr.bf16.mxu0 0
    %1226 = vmatpush1.bf16.msra.mxu0 0
    %1227 = vmatprep.mubr.bf16.mxu0 0
    %1228 = vmatmul.mubr.bf16.gmra.mrb[0].mxu0 %v1190
    %v1229 = vpop.f32.mrb[0].mxu0
    %v1230 = vadd.f32 0.0, %v1229
    %v1231 = vpop.f32.mrb[0].mxu0
    %v1232 = vpop.f32.mrb[0].mxu0
    %v1233 = vpop.f32.mrb[0].mxu0
    %1234 = vdwg.mxu0
    %v1236 = vsel %vm891, %v1001, 0
    %v1239 = vsel %vm1007, %v511, 0
    %1241 = vmatprep.subr.bf16.mxu0 0
    %1242 = vmatpush1.bf16.msra.mxu0 %v1239
    %1243 = vmatprep.subr.bf16.mxu0 0
    %1244 = vmatpush1.bf16.msra.mxu0 0
    %1245 = vmatprep.subr.bf16.mxu0 0
    %1246 = vmatpush1.bf16.msra.mxu0 0
    %1247 = vmatprep.subr.bf16.mxu0 0
    %1248 = vmatpush1.bf16.msra.mxu0 0
    %1249 = vmatprep.subr.bf16.mxu0 0
    %1250 = vmatpush1.bf16.msra.mxu0 0
    %1251 = vmatprep.subr.bf16.mxu0 0
    %1252 = vmatpush1.bf16.msra.mxu0 0
    %1253 = vmatprep.subr.bf16.mxu0 0
    %1254 = vmatpush1.bf16.msra.mxu0 0
    %1255 = vmatprep.subr.bf16.mxu0 0
    %1256 = vmatpush1.bf16.msra.mxu0 0
    %1257 = vmatprep.subr.bf16.mxu0 0
    %1258 = vmatpush1.bf16.msra.mxu0 0
    %1259 = vmatprep.subr.bf16.mxu0 0
    %1260 = vmatpush1.bf16.msra.mxu0 0
    %1261 = vmatprep.subr.bf16.mxu0 0
    %1262 = vmatpush1.bf16.msra.mxu0 0
    %1263 = vmatprep.subr.bf16.mxu0 0
    %1264 = vmatpush1.bf16.msra.mxu0 0
    %1265 = vmatprep.subr.bf16.mxu0 0
    %1266 = vmatpush1.bf16.msra.mxu0 0
    %1267 = vmatprep.subr.bf16.mxu0 0
    %1268 = vmatpush1.bf16.msra.mxu0 0
    %1269 = vmatprep.subr.bf16.mxu0 0
    %1270 = vmatpush1.bf16.msra.mxu0 0
    %1271 = vmatprep.subr.bf16.mxu0 0
    %1272 = vmatpush1.bf16.msra.mxu0 0
    %1273 = vmatprep.mubr.bf16.mxu0 0
    %1274 = vmatmul.mubr.bf16.gmra.mrb[0].mxu0 %v1236
    %v1275 = vpop.f32.mrb[0].mxu0
    %v1276 = vadd.f32 0.0, %v1275
    %v1277 = vpop.f32.mrb[0].mxu0
    %v1278 = vpop.f32.mrb[0].mxu0
    %v1279 = vpop.f32.mrb[0].mxu0
    %1280 = vdwg.mxu0
    %v1282 = vsel %vm891, %v1002, 0
    %v1285 = vsel %vm1007, %v512, 0
    %1287 = vmatprep.subr.bf16.mxu0 0
    %1288 = vmatpush1.bf16.msra.mxu0 %v1285
    %1289 = vmatprep.subr.bf16.mxu0 0
    %1290 = vmatpush1.bf16.msra.mxu0 0
    %1291 = vmatprep.subr.bf16.mxu0 0
    %1292 = vmatpush1.bf16.msra.mxu0 0
    %1293 = vmatprep.subr.bf16.mxu0 0
    %1294 = vmatpush1.bf16.msra.mxu0 0
    %1295 = vmatprep.subr.bf16.mxu0 0
    %1296 = vmatpush1.bf16.msra.mxu0 0
    %1297 = vmatprep.subr.bf16.mxu0 0
    %1298 = vmatpush1.bf16.msra.mxu0 0
    %1299 = vmatprep.subr.bf16.mxu0 0
    %1300 = vmatpush1.bf16.msra.mxu0 0
    %1301 = vmatprep.subr.bf16.mxu0 0
    %1302 = vmatpush1.bf16.msra.mxu0 0
    %1303 = vmatprep.subr.bf16.mxu0 0
    %1304 = vmatpush1.bf16.msra.mxu0 0
    %1305 = vmatprep.subr.bf16.mxu0 0
    %1306 = vmatpush1.bf16.msra.mxu0 0
    %1307 = vmatprep.subr.bf16.mxu0 0
    %1308 = vmatpush1.bf16.msra.mxu0 0
    %1309 = vmatprep.subr.bf16.mxu0 0
    %1310 = vmatpush1.bf16.msra.mxu0 0
    %1311 = vmatprep.subr.bf16.mxu0 0
    %1312 = vmatpush1.bf16.msra.mxu0 0
    %1313 = vmatprep.subr.bf16.mxu0 0
    %1314 = vmatpush1.bf16.msra.mxu0 0
    %1315 = vmatprep.subr.bf16.mxu0 0
    %1316 = vmatpush1.bf16.msra.mxu0 0
    %1317 = vmatprep.subr.bf16.mxu0 0
    %1318 = vmatpush1.bf16.msra.mxu0 0
    %1319 = vmatprep.mubr.bf16.mxu0 0
    %1320 = vmatmul.mubr.bf16.gmra.mrb[0].mxu0 %v1282
    %v1321 = vpop.f32.mrb[0].mxu0
    %v1322 = vadd.f32 0.0, %v1321
    %v1323 = vpop.f32.mrb[0].mxu0
    %v1324 = vpop.f32.mrb[0].mxu0
    %v1325 = vpop.f32.mrb[0].mxu0
    %1326 = vdwg.mxu0
    %v1328 = vsel %vm891, %v1003, 0
    %v1331 = vsel %vm1007, %v513, 0
    %1333 = vmatprep.subr.bf16.mxu0 0
    %1334 = vmatpush1.bf16.msra.mxu0 %v1331
    %1335 = vmatprep.subr.bf16.mxu0 0
    %1336 = vmatpush1.bf16.msra.mxu0 0
    %1337 = vmatprep.subr.bf16.mxu0 0
    %1338 = vmatpush1.bf16.msra.mxu0 0
    %1339 = vmatprep.subr.bf16.mxu0 0
    %1340 = vmatpush1.bf16.msra.mxu0 0
    %1341 = vmatprep.subr.bf16.mxu0 0
    %1342 = vmatpush1.bf16.msra.mxu0 0
    %1343 = vmatprep.subr.bf16.mxu0 0
    %1344 = vmatpush1.bf16.msra.mxu0 0
    %1345 = vmatprep.subr.bf16.mxu0 0
    %1346 = vmatpush1.bf16.msra.mxu0 0
    %1347 = vmatprep.subr.bf16.mxu0 0
    %1348 = vmatpush1.bf16.msra.mxu0 0
    %1349 = vmatprep.subr.bf16.mxu0 0
    %1350 = vmatpush1.bf16.msra.mxu0 0
    %1351 = vmatprep.subr.bf16.mxu0 0
    %1352 = vmatpush1.bf16.msra.mxu0 0
    %1353 = vmatprep.subr.bf16.mxu0 0
    %1354 = vmatpush1.bf16.msra.mxu0 0
    %1355 = vmatprep.subr.bf16.mxu0 0
    %1356 = vmatpush1.bf16.msra.mxu0 0
    %1357 = vmatprep.subr.bf16.mxu0 0
    %1358 = vmatpush1.bf16.msra.mxu0 0
    %1359 = vmatprep.subr.bf16.mxu0 0
    %1360 = vmatpush1.bf16.msra.mxu0 0
    %1361 = vmatprep.subr.bf16.mxu0 0
    %1362 = vmatpush1.bf16.msra.mxu0 0
    %1363 = vmatprep.subr.bf16.mxu0 0
    %1364 = vmatpush1.bf16.msra.mxu0 0
    %1365 = vmatprep.mubr.bf16.mxu0 0
    %1366 = vmatmul.mubr.bf16.gmra.mrb[0].mxu0 %v1328
    %v1367 = vpop.f32.mrb[0].mxu0
    %v1368 = vadd.f32 0.0, %v1367
    %v1369 = vpop.f32.mrb[0].mxu0
    %v1370 = vpop.f32.mrb[0].mxu0
    %v1371 = vpop.f32.mrb[0].mxu0
    %1372 = vdwg.mxu0
    %1375 = vrot.lane.b32.xlu0 %v1138, 32
    %v1376 = vpop.permute.xlu0 %1375
    %1377 = vrot.lane.b32.xlu0 %v1184, 32
    %v1378 = vpop.permute.xlu0 %1377
    %1383 = vrot.lane.b32.xlu0 %v1230, 64
    %v1384 = vpop.permute.xlu0 %1383
    %1385 = vrot.lane.b32.xlu0 %v1276, 64
    %v1386 = vpop.permute.xlu0 %1385
    %1391 = vrot.lane.b32.xlu0 %v1322, 96
    %v1392 = vpop.permute.xlu0 %1391
    %1393 = vrot.lane.b32.xlu0 %v1368, 96
    %v1394 = vpop.permute.xlu0 %1393
    %v1397 = vsel %vm514, %v1046, %v1376
    %v1398 = vsel %vm514, %v1092, %v1378
    %vm1399 = vcmask 523264
    %v1400 = vsel %vm1399, %v1397, %v1384
    %v1401 = vsel %vm1399, %v1398, %v1386
    %vm1402 = vcmask 785408
    %v1403 = vsel %vm1402, %v1400, %v1392
    %v1404 = vsel %vm1402, %v1401, %v1394
    %v1405 = vpack.c.bf16 %v1404, %v1403
    %v1406 = vld [vmem:[#allocation10] sm:$0xf]
    %v1407 = vld [vmem:[#allocation10 + $0x4] sm:$0xf]
    %v1408 = vld [vmem:[#allocation10 + $0x8] sm:$0xf]
    %v1409 = vld [vmem:[#allocation10 + $0xc] sm:$0xf]
    %v1410 = vld [vmem:[#allocation10 + $0x10] sm:$0xf]
    %v1411 = vld [vmem:[#allocation10 + $0x14] sm:$0xf]
    %v1412 = vld [vmem:[#allocation10 + $0x18] sm:$0xf]
    %v1413 = vld [vmem:[#allocation10 + $0x1c] sm:$0xf]
    %v1414 = vld [vmem:[#allocation10 + $0x20] sm:$0xf]
    %v1415 = vld [vmem:[#allocation10 + $0x24] sm:$0xf]
    %v1416 = vld [vmem:[#allocation10 + $0x28] sm:$0xf]
    %v1417 = vld [vmem:[#allocation10 + $0x2c] sm:$0xf]
    %v1418 = vld [vmem:[#allocation10 + $0x30] sm:$0xf]
    %v1419 = vld [vmem:[#allocation10 + $0x34] sm:$0xf]
    %v1420 = vld [vmem:[#allocation10 + $0x38] sm:$0xf]
    %v1421 = vld [vmem:[#allocation10 + $0x3c] sm:$0xf]
    %v1422 = vld [vmem:[%s6] sm:$0x1]
    %v1424 = vlaneseq
    %v1425 = vshrl.u32 %v1424, 7
    %v1426 = vsub.s32 0, %v1425
    %v1427 = vrot.slane %v1422, %v1426
    %v1445 = vunpack.c.l.b16 %v1406
    %v1446 = vunpack.c.l.b16 %v1407
    %v1447 = vunpack.c.l.b16 %v1408
    %v1448 = vunpack.c.l.b16 %v1409
    %v1449 = vunpack.c.l.b16 %v1410
    %v1450 = vunpack.c.l.b16 %v1411
    %v1451 = vunpack.c.l.b16 %v1412
    %v1452 = vunpack.c.l.b16 %v1413
    %v1453 = vunpack.c.l.b16 %v1414
    %v1454 = vunpack.c.l.b16 %v1415
    %v1455 = vunpack.c.l.b16 %v1416
    %v1456 = vunpack.c.l.b16 %v1417
    %v1457 = vunpack.c.l.b16 %v1418
    %v1458 = vunpack.c.l.b16 %v1419
    %v1459 = vunpack.c.l.b16 %v1420
    %v1460 = vunpack.c.l.b16 %v1421
    %v1461 = vpack.c.b16 %v1446, %v1445
    %v1462 = vpack.c.b16 %v1448, %v1447
    %v1463 = vpack.c.b16 %v1450, %v1449
    %v1464 = vpack.c.b16 %v1452, %v1451
    %v1465 = vpack.c.b16 %v1454, %v1453
    %v1466 = vpack.c.b16 %v1456, %v1455
    %v1467 = vpack.c.b16 %v1458, %v1457
    %v1468 = vpack.c.b16 %v1460, %v1459
    %1477 = vmatprep.subr.bf16.mxu0 0
    %1478 = vmatpush1.bf16.msra.mxu0 %v1461
    %1479 = vmatprep.subr.bf16.mxu0 0
    %1480 = vmatpush1.bf16.msra.mxu0 %v1462
    %1481 = vmatprep.subr.bf16.mxu0 0
    %1482 = vmatpush1.bf16.msra.mxu0 %v1463
    %1483 = vmatprep.subr.bf16.mxu0 0
    %1484 = vmatpush1.bf16.msra.mxu0 %v1464
    %1485 = vmatprep.subr.bf16.mxu0 0
    %1486 = vmatpush1.bf16.msra.mxu0 %v1465
    %1487 = vmatprep.subr.bf16.mxu0 0
    %1488 = vmatpush1.bf16.msra.mxu0 %v1466
    %1489 = vmatprep.subr.bf16.mxu0 0
    %1490 = vmatpush1.bf16.msra.mxu0 %v1467
    %1491 = vmatprep.subr.bf16.mxu0 0
    %1492 = vmatpush1.bf16.msra.mxu0 %v1468
    %1493 = vmatprep.subr.bf16.mxu0 0
    %1494 = vmatpush1.bf16.msra.mxu0 0
    %1495 = vmatprep.subr.bf16.mxu0 0
    %1496 = vmatpush1.bf16.msra.mxu0 0
    %1497 = vmatprep.subr.bf16.mxu0 0
    %1498 = vmatpush1.bf16.msra.mxu0 0
    %1499 = vmatprep.subr.bf16.mxu0 0
    %1500 = vmatpush1.bf16.msra.mxu0 0
    %1501 = vmatprep.subr.bf16.mxu0 0
    %1502 = vmatpush1.bf16.msra.mxu0 0
    %1503 = vmatprep.subr.bf16.mxu0 0
    %1504 = vmatpush1.bf16.msra.mxu0 0
    %1505 = vmatprep.subr.bf16.mxu0 0
    %1506 = vmatpush1.bf16.msra.mxu0 0
    %1507 = vmatprep.subr.bf16.mxu0 0
    %1508 = vmatpush1.bf16.msra.mxu0 0
    %1509 = vmatprep.mubr.bf16.mxu0 0
    %1510 = vmatmul.mubr.bf16.gmra.mrb[0].mxu0 %v1405
    %v1511 = vpop.f32.mrb[0].mxu0
    %v1512 = vadd.f32 %v1427, %v1511
    %v1513 = vpop.f32.mrb[0].mxu0
    %v1514 = vpop.f32.mrb[0].mxu0
    %v1515 = vadd.f32 %v1427, %v1514
    %v1516 = vpop.f32.mrb[0].mxu0
    %1517 = vdwg.mxu0
    %v1518 = vadd.f32 %v137, %v1512
    %v1519 = vadd.f32 %v138, %v1515
    %v1520 = vld [vmem:[%s7] sm:$0x1]
    %v1521 = vld [vmem:[%s8] sm:$0x1]
    %1522 = vadd.xlane.f32.xlu0 %v1518
    %v1523 = vpop.xlane.xlu0 %1522
    %1524 = vadd.xlane.f32.xlu0 %v1519
    %v1525 = vpop.xlane.xlu0 %1524
    %v1526 = vmul.f32 %v1523, %v145
    %v1527 = vmul.f32 %v1525, %v145
    %v1528 = vsub.f32 %v1518, %v1526
    %v1529 = vsub.f32 %v1519, %v1527
    %v1530 = vmul.f32 %v1528, %v1528
    %v1531 = vmul.f32 %v1529, %v1529
    %1532 = vadd.xlane.f32.xlu0 %v1530
    %v1533 = vpop.xlane.xlu0 %1532
    %1534 = vadd.xlane.f32.xlu0 %v1531
    %v1535 = vpop.xlane.xlu0 %1534
    %v1536 = vmul.f32 %v1533, %v145
    %v1537 = vmul.f32 %v1535, %v145
    %v1538 = vadd.f32 %v1536, 1e-05
    %v1539 = vadd.f32 %v1537, 1e-05
    %v1540 = vrsqrt.pop %v1538
    %v1541 = vrsqrt.pop %v1539
    %v1542 = vmul.f32 %v1528, %v1540
    %v1543 = vmul.f32 %v1529, %v1541
    %v1545 = vlaneseq
    %v1546 = vshrl.u32 %v1545, 7
    %v1547 = vsub.s32 0, %v1546
    %v1548 = vrot.slane %v1520, %v1547
    %v1550 = vmul.f32 %v1542, %v1548
    %v1551 = vmul.f32 %v1543, %v1548
    %v1553 = vlaneseq
    %v1554 = vshrl.u32 %v1553, 7
    %v1555 = vsub.s32 0, %v1554
    %v1556 = vrot.slane %v1521, %v1555
    %v1558 = vadd.f32 %v1550, %v1556
    %v1559 = vadd.f32 %v1551, %v1556
    %v1560 = vpack.c.bf16 %v1559, %v1558
    %v1561 = vld [vmem:[#allocation11] sm:$0xff]
    %v1562 = vld [vmem:[#allocation11 + $0x8] sm:$0xff]
    %v1563 = vld [vmem:[#allocation11 + $0x10] sm:$0xff]
    %v1564 = vld [vmem:[#allocation11 + $0x18] sm:$0xff]
    %v1565 = vld [vmem:[#allocation11 + $0x20] sm:$0xff]
    %v1566 = vld [vmem:[#allocation11 + $0x28] sm:$0xff]
    %v1567 = vld [vmem:[#allocation11 + $0x30] sm:$0xff]
    %v1568 = vld [vmem:[#allocation11 + $0x38] sm:$0xff]
    %v1569 = vld [vmem:[#allocation11 + $0x40] sm:$0xff]
    %v1570 = vld [vmem:[#allocation11 + $0x48] sm:$0xff]
    %v1571 = vld [vmem:[#allocation11 + $0x50] sm:$0xff]
    %v1572 = vld [vmem:[#allocation11 + $0x58] sm:$0xff]
    %v1573 = vld [vmem:[#allocation11 + $0x60] sm:$0xff]
    %v1574 = vld [vmem:[#allocation11 + $0x68] sm:$0xff]
    %v1575 = vld [vmem:[#allocation11 + $0x70] sm:$0xff]
    %v1576 = vld [vmem:[#allocation11 + $0x78] sm:$0xff]
    %v1577 = vld [vmem:[#allocation11 + $0x80] sm:$0xff]
    %v1578 = vld [vmem:[#allocation11 + $0x88] sm:$0xff]
    %v1579 = vld [vmem:[#allocation11 + $0x90] sm:$0xff]
    %v1580 = vld [vmem:[#allocation11 + $0x98] sm:$0xff]
    %v1581 = vld [vmem:[#allocation11 + $0xa0] sm:$0xff]
    %v1582 = vld [vmem:[#allocation11 + $0xa8] sm:$0xff]
    %v1583 = vld [vmem:[#allocation11 + $0xb0] sm:$0xff]
    %v1584 = vld [vmem:[#allocation11 + $0xb8] sm:$0xff]
    %v1585 = vld [vmem:[#allocation11 + $0xc0] sm:$0xff]
    %v1586 = vld [vmem:[#allocation11 + $0xc8] sm:$0xff]
    %v1587 = vld [vmem:[#allocation11 + $0xd0] sm:$0xff]
    %v1588 = vld [vmem:[#allocation11 + $0xd8] sm:$0xff]
    %v1589 = vld [vmem:[#allocation11 + $0xe0] sm:$0xff]
    %v1590 = vld [vmem:[#allocation11 + $0xe8] sm:$0xff]
    %v1591 = vld [vmem:[#allocation11 + $0xf0] sm:$0xff]
    %v1592 = vld [vmem:[#allocation11 + $0xf8] sm:$0xff]
    %v1593 = vld [vmem:[%s10] sm:$0xf]
    %v1595 = vlaneseq
    %v1596 = vshrl.u32 %v1595, 7
    %v1597 = vsub.s32 0, %v1596
    %v1598 = vrot.slane %v1593, %v1597
    %v1599 = vlaneseq
    %v1600 = vshrl.u32 %v1599, 7
    %v1601 = vsub.s32 1, %v1600
    %v1602 = vrot.slane %v1593, %v1601
    %v1603 = vlaneseq
    %v1604 = vshrl.u32 %v1603, 7
    %v1605 = vsub.s32 2, %v1604
    %v1606 = vrot.slane %v1593, %v1605
    %v1607 = vlaneseq
    %v1608 = vshrl.u32 %v1607, 7
    %v1609 = vsub.s32 3, %v1608
    %v1610 = vrot.slane %v1593, %v1609
    %v1647 = vunpack.c.l.b16 %v1561
    %v1648 = vunpack.c.h.b16 %v1561
    %v1649 = vunpack.c.l.b16 %v1562
    %v1650 = vunpack.c.h.b16 %v1562
    %v1651 = vunpack.c.l.b16 %v1563
    %v1652 = vunpack.c.h.b16 %v1563
    %v1653 = vunpack.c.l.b16 %v1564
    %v1654 = vunpack.c.h.b16 %v1564
    %v1655 = vunpack.c.l.b16 %v1565
    %v1656 = vunpack.c.h.b16 %v1565
    %v1657 = vunpack.c.l.b16 %v1566
    %v1658 = vunpack.c.h.b16 %v1566
    %v1659 = vunpack.c.l.b16 %v1567
    %v1660 = vunpack.c.h.b16 %v1567
    %v1661 = vunpack.c.l.b16 %v1568
    %v1662 = vunpack.c.h.b16 %v1568
    %v1663 = vunpack.c.l.b16 %v1569
    %v1664 = vunpack.c.h.b16 %v1569
    %v1665 = vunpack.c.l.b16 %v1570
    %v1666 = vunpack.c.h.b16 %v1570
    %v1667 = vunpack.c.l.b16 %v1571
    %v1668 = vunpack.c.h.b16 %v1571
    %v1669 = vunpack.c.l.b16 %v1572
    %v1670 = vunpack.c.h.b16 %v1572
    %v1671 = vunpack.c.l.b16 %v1573
    %v1672 = vunpack.c.h.b16 %v1573
    %v1673 = vunpack.c.l.b16 %v1574
    %v1674 = vunpack.c.h.b16 %v1574
    %v1675 = vunpack.c.l.b16 %v1575
    %v1676 = vunpack.c.h.b16 %v1575
    %v1677 = vunpack.c.l.b16 %v1576
    %v1678 = vunpack.c.h.b16 %v1576
    %v1679 = vunpack.c.l.b16 %v1577
    %v1680 = vunpack.c.h.b16 %v1577
    %v1681 = vunpack.c.l.b16 %v1578
    %v1682 = vunpack.c.h.b16 %v1578
    %v1683 = vunpack.c.l.b16 %v1579
    %v1684 = vunpack.c.h.b16 %v1579
    %v1685 = vunpack.c.l.b16 %v1580
    %v1686 = vunpack.c.h.b16 %v1580
    %v1687 = vunpack.c.l.b16 %v1581
    %v1688 = vunpack.c.h.b16 %v1581
    %v1689 = vunpack.c.l.b16 %v1582
    %v1690 = vunpack.c.h.b16 %v1582
    %v1691 = vunpack.c.l.b16 %v1583
    %v1692 = vunpack.c.h.b16 %v1583
    %v1693 = vunpack.c.l.b16 %v1584
    %v1694 = vunpack.c.h.b16 %v1584
    %v1695 = vunpack.c.l.b16 %v1585
    %v1696 = vunpack.c.h.b16 %v1585
    %v1697 = vunpack.c.l.b16 %v1586
    %v1698 = vunpack.c.h.b16 %v1586
    %v1699 = vunpack.c.l.b16 %v1587
    %v1700 = vunpack.c.h.b16 %v1587
    %v1701 = vunpack.c.l.b16 %v1588
    %v1702 = vunpack.c.h.b16 %v1588
    %v1703 = vunpack.c.l.b16 %v1589
    %v1704 = vunpack.c.h.b16 %v1589
    %v1705 = vunpack.c.l.b16 %v1590
    %v1706 = vunpack.c.h.b16 %v1590
    %v1707 = vunpack.c.l.b16 %v1591
    %v1708 = vunpack.c.h.b16 %v1591
    %v1709 = vunpack.c.l.b16 %v1592
    %v1710 = vunpack.c.h.b16 %v1592
    %v1711 = vpack.c.b16 %v1651, %v1647
    %v1712 = vpack.c.b16 %v1652, %v1648
    %v1713 = vpack.c.b16 %v1653, %v1649
    %v1714 = vpack.c.b16 %v1654, %v1650
    %v1715 = vpack.c.b16 %v1659, %v1655
    %v1716 = vpack.c.b16 %v1660, %v1656
    %v1717 = vpack.c.b16 %v1661, %v1657
    %v1718 = vpack.c.b16 %v1662, %v1658
    %v1719 = vpack.c.b16 %v1667, %v1663
    %v1720 = vpack.c.b16 %v1668, %v1664
    %v1721 = vpack.c.b16 %v1669, %v1665
    %v1722 = vpack.c.b16 %v1670, %v1666
    %v1723 = vpack.c.b16 %v1675, %v1671
    %v1724 = vpack.c.b16 %v1676, %v1672
    %v1725 = vpack.c.b16 %v1677, %v1673
    %v1726 = vpack.c.b16 %v1678, %v1674
    %v1727 = vpack.c.b16 %v1683, %v1679
    %v1728 = vpack.c.b16 %v1684, %v1680
    %v1729 = vpack.c.b16 %v1685, %v1681
    %v1730 = vpack.c.b16 %v1686, %v1682
    %v1731 = vpack.c.b16 %v1691, %v1687
    %v1732 = vpack.c.b16 %v1692, %v1688
    %v1733 = vpack.c.b16 %v1693, %v1689
    %v1734 = vpack.c.b16 %v1694, %v1690
    %v1735 = vpack.c.b16 %v1699, %v1695
    %v1736 = vpack.c.b16 %v1700, %v1696
    %v1737 = vpack.c.b16 %v1701, %v1697
    %v1738 = vpack.c.b16 %v1702, %v1698
    %v1739 = vpack.c.b16 %v1707, %v1703
    %v1740 = vpack.c.b16 %v1708, %v1704
    %v1741 = vpack.c.b16 %v1709, %v1705
    %v1742 = vpack.c.b16 %v1710, %v1706
    %1775 = vmatprep.subr.bf16.mxu0 %v1712
    %1776 = vmatpush1.bf16.msra.mxu0 %v1711
    %1777 = vmatprep.subr.bf16.mxu0 %v1716
    %1778 = vmatpush1.bf16.msra.mxu0 %v1715
    %1779 = vmatprep.subr.bf16.mxu0 %v1720
    %1780 = vmatpush1.bf16.msra.mxu0 %v1719
    %1781 = vmatprep.subr.bf16.mxu0 %v1724
    %1782 = vmatpush1.bf16.msra.mxu0 %v1723
    %1783 = vmatprep.subr.bf16.mxu0 %v1728
    %1784 = vmatpush1.bf16.msra.mxu0 %v1727
    %1785 = vmatprep.subr.bf16.mxu0 %v1732
    %1786 = vmatpush1.bf16.msra.mxu0 %v1731
    %1787 = vmatprep.subr.bf16.mxu0 %v1736
    %1788 = vmatpush1.bf16.msra.mxu0 %v1735
    %1789 = vmatprep.subr.bf16.mxu0 %v1740
    %1790 = vmatpush1.bf16.msra.mxu0 %v1739
    %1791 = vmatprep.subr.bf16.mxu0 0
    %1792 = vmatpush1.bf16.msra.mxu0 0
    %1793 = vmatprep.subr.bf16.mxu0 0
    %1794 = vmatpush1.bf16.msra.mxu0 0
    %1795 = vmatprep.subr.bf16.mxu0 0
    %1796 = vmatpush1.bf16.msra.mxu0 0
    %1797 = vmatprep.subr.bf16.mxu0 0
    %1798 = vmatpush1.bf16.msra.mxu0 0
    %1799 = vmatprep.subr.bf16.mxu0 0
    %1800 = vmatpush1.bf16.msra.mxu0 0
    %1801 = vmatprep.subr.bf16.mxu0 0
    %1802 = vmatpush1.bf16.msra.mxu0 0
    %1803 = vmatprep.subr.bf16.mxu0 0
    %1804 = vmatpush1.bf16.msra.mxu0 0
    %1805 = vmatprep.subr.bf16.mxu0 0
    %1806 = vmatpush1.bf16.msra.mxu0 0
    %1807 = vmatprep.mubr.bf16.mxu0 0
    %1808 = vmatmul.mubr.bf16.gmra.mrb[0].mxu0 %v1560
    %v1809 = vpop.f32.mrb[0].mxu0
    %v1810 = vadd.f32 %v1598, %v1809
    %v1811 = vpop.f32.mrb[0].mxu0
    %v1812 = vadd.f32 %v1602, %v1811
    %v1813 = vpop.f32.mrb[0].mxu0
    %v1814 = vadd.f32 %v1598, %v1813
    %v1815 = vpop.f32.mrb[0].mxu0
    %v1816 = vadd.f32 %v1602, %v1815
    %1817 = vdwg.mxu0
    %1818 = vmatprep.subr.bf16.mxu0 %v1714
    %1819 = vmatpush1.bf16.msra.mxu0 %v1713
    %1820 = vmatprep.subr.bf16.mxu0 %v1718
    %1821 = vmatpush1.bf16.msra.mxu0 %v1717
    %1822 = vmatprep.subr.bf16.mxu0 %v1722
    %1823 = vmatpush1.bf16.msra.mxu0 %v1721
    %1824 = vmatprep.subr.bf16.mxu0 %v1726
    %1825 = vmatpush1.bf16.msra.mxu0 %v1725
    %1826 = vmatprep.subr.bf16.mxu0 %v1730
    %1827 = vmatpush1.bf16.msra.mxu0 %v1729
    %1828 = vmatprep.subr.bf16.mxu0 %v1734
    %1829 = vmatpush1.bf16.msra.mxu0 %v1733
    %1830 = vmatprep.subr.bf16.mxu0 %v1738
    %1831 = vmatpush1.bf16.msra.mxu0 %v1737
    %1832 = vmatprep.subr.bf16.mxu0 %v1742
    %1833 = vmatpush1.bf16.msra.mxu0 %v1741
    %1834 = vmatprep.subr.bf16.mxu0 0
    %1835 = vmatpush1.bf16.msra.mxu0 0
    %1836 = vmatprep.subr.bf16.mxu0 0
    %1837 = vmatpush1.bf16.msra.mxu0 0
    %1838 = vmatprep.subr.bf16.mxu0 0
    %1839 = vmatpush1.bf16.msra.mxu0 0
    %1840 = vmatprep.subr.bf16.mxu0 0
    %1841 = vmatpush1.bf16.msra.mxu0 0
    %1842 = vmatprep.subr.bf16.mxu0 0
    %1843 = vmatpush1.bf16.msra.mxu0 0
    %1844 = vmatprep.subr.bf16.mxu0 0
    %1845 = vmatpush1.bf16.msra.mxu0 0
    %1846 = vmatprep.subr.bf16.mxu0 0
    %1847 = vmatpush1.bf16.msra.mxu0 0
    %1848 = vmatprep.subr.bf16.mxu0 0
    %1849 = vmatpush1.bf16.msra.mxu0 0
    %1850 = vmatprep.mubr.bf16.mxu0 0
    %1851 = vmatmul.mubr.bf16.gmra.mrb[0].mxu0 %v1560
    %v1852 = vpop.f32.mrb[0].mxu0
    %v1853 = vadd.f32 %v1606, %v1852
    %v1854 = vpop.f32.mrb[0].mxu0
    %v1855 = vadd.f32 %v1610, %v1854
    %v1856 = vpop.f32.mrb[0].mxu0
    %v1857 = vadd.f32 %v1606, %v1856
    %v1858 = vpop.f32.mrb[0].mxu0
    %v1859 = vadd.f32 %v1610, %v1858
    %1860 = vdwg.mxu0
    %v1861 = vmul.f32 %v1810, 1.702
    %v1862 = vmul.f32 %v1812, 1.702
    %v1863 = vmul.f32 %v1853, 1.702
    %v1864 = vmul.f32 %v1855, 1.702
    %v1865 = vmul.f32 %v1814, 1.702
    %v1866 = vmul.f32 %v1816, 1.702
    %v1867 = vmul.f32 %v1857, 1.702
    %v1868 = vmul.f32 %v1859, 1.702
    %v1869 = vxor.u32 %v1861, 2147483648
    %v1870 = vxor.u32 %v1862, 2147483648
    %v1871 = vxor.u32 %v1863, 2147483648
    %v1872 = vxor.u32 %v1864, 2147483648
    %v1873 = vxor.u32 %v1865, 2147483648
    %v1874 = vxor.u32 %v1866, 2147483648
    %v1875 = vxor.u32 %v1867, 2147483648
    %v1876 = vxor.u32 %v1868, 2147483648
    %v1877 = vmul.f32 %v1869, 1.442695
    %v1878 = vpow.pop %v1877
    %v1879 = vmul.f32 %v1870, 1.442695
    %v1880 = vpow.pop %v1879
    %v1881 = vmul.f32 %v1871, 1.442695
    %v1882 = vpow.pop %v1881
    %v1883 = vmul.f32 %v1872, 1.442695
    %v1884 = vpow.pop %v1883
    %v1885 = vmul.f32 %v1873, 1.442695
    %v1886 = vpow.pop %v1885
    %v1887 = vmul.f32 %v1874, 1.442695
    %v1888 = vpow.pop %v1887
    %v1889 = vmul.f32 %v1875, 1.442695
    %v1890 = vpow.pop %v1889
    %v1891 = vmul.f32 %v1876, 1.442695
    %v1892 = vpow.pop %v1891
    %v1893 = vadd.f32 %v1878, 1.0
    %v1894 = vadd.f32 %v1880, 1.0
    %v1895 = vadd.f32 %v1882, 1.0
    %v1896 = vadd.f32 %v1884, 1.0
    %v1897 = vadd.f32 %v1886, 1.0
    %v1898 = vadd.f32 %v1888, 1.0
    %v1899 = vadd.f32 %v1890, 1.0
    %v1900 = vadd.f32 %v1892, 1.0
    %v1901 = vrcp.pop %v1893
    %v1902 = vmul.f32 1.0, %v1901
    %v1903 = vrcp.pop %v1894
    %v1904 = vmul.f32 1.0, %v1903
    %v1905 = vrcp.pop %v1895
    %v1906 = vmul.f32 1.0, %v1905
    %v1907 = vrcp.pop %v1896
    %v1908 = vmul.f32 1.0, %v1907
    %v1909 = vrcp.pop %v1897
    %v1910 = vmul.f32 1.0, %v1909
    %v1911 = vrcp.pop %v1898
    %v1912 = vmul.f32 1.0, %v1911
    %v1913 = vrcp.pop %v1899
    %v1914 = vmul.f32 1.0, %v1913
    %v1915 = vrcp.pop %v1900
    %v1916 = vmul.f32 1.0, %v1915
    %v1917 = vmul.f32 %v1810, %v1902
    %v1918 = vmul.f32 %v1812, %v1904
    %v1919 = vmul.f32 %v1853, %v1906
    %v1920 = vmul.f32 %v1855, %v1908
    %v1921 = vmul.f32 %v1814, %v1910
    %v1922 = vmul.f32 %v1816, %v1912
    %v1923 = vmul.f32 %v1857, %v1914
    %v1924 = vmul.f32 %v1859, %v1916
    %v1925 = vpack.c.bf16 %v1921, %v1917
    %v1926 = vpack.c.bf16 %v1922, %v1918
    %v1927 = vpack.c.bf16 %v1923, %v1919
    %v1928 = vpack.c.bf16 %v1924, %v1920
    %v1929 = vld [vmem:[#allocation13] sm:$0xf]
    %v1930 = vld [vmem:[#allocation13 + $0x4] sm:$0xf]
    %v1931 = vld [vmem:[#allocation13 + $0x8] sm:$0xf]
    %v1932 = vld [vmem:[#allocation13 + $0xc] sm:$0xf]
    %v1933 = vld [vmem:[#allocation13 + $0x10] sm:$0xf]
    %v1934 = vld [vmem:[#allocation13 + $0x14] sm:$0xf]
    %v1935 = vld [vmem:[#allocation13 + $0x18] sm:$0xf]
    %v1936 = vld [vmem:[#allocation13 + $0x1c] sm:$0xf]
    %v1937 = vld [vmem:[#allocation13 + $0x20] sm:$0xf]
    %v1938 = vld [vmem:[#allocation13 + $0x24] sm:$0xf]
    %v1939 = vld [vmem:[#allocation13 + $0x28] sm:$0xf]
    %v1940 = vld [vmem:[#allocation13 + $0x2c] sm:$0xf]
    %v1941 = vld [vmem:[#allocation13 + $0x30] sm:$0xf]
    %v1942 = vld [vmem:[#allocation13 + $0x34] sm:$0xf]
    %v1943 = vld [vmem:[#allocation13 + $0x38] sm:$0xf]
    %v1944 = vld [vmem:[#allocation13 + $0x3c] sm:$0xf]
    %v1945 = vld [vmem:[#allocation13 + $0x40] sm:$0xf]
    %v1946 = vld [vmem:[#allocation13 + $0x44] sm:$0xf]
    %v1947 = vld [vmem:[#allocation13 + $0x48] sm:$0xf]
    %v1948 = vld [vmem:[#allocation13 + $0x4c] sm:$0xf]
    %v1949 = vld [vmem:[#allocation13 + $0x50] sm:$0xf]
    %v1950 = vld [vmem:[#allocation13 + $0x54] sm:$0xf]
    %v1951 = vld [vmem:[#allocation13 + $0x58] sm:$0xf]
    %v1952 = vld [vmem:[#allocation13 + $0x5c] sm:$0xf]
    %v1953 = vld [vmem:[#allocation13 + $0x60] sm:$0xf]
    %v1954 = vld [vmem:[#allocation13 + $0x64] sm:$0xf]
    %v1955 = vld [vmem:[#allocation13 + $0x68] sm:$0xf]
    %v1956 = vld [vmem:[#allocation13 + $0x6c] sm:$0xf]
    %v1957 = vld [vmem:[#allocation13 + $0x70] sm:$0xf]
    %v1958 = vld [vmem:[#allocation13 + $0x74] sm:$0xf]
    %v1959 = vld [vmem:[#allocation13 + $0x78] sm:$0xf]
    %v1960 = vld [vmem:[#allocation13 + $0x7c] sm:$0xf]
    %v1961 = vld [vmem:[#allocation13 + $0x80] sm:$0xf]
    %v1962 = vld [vmem:[#allocation13 + $0x84] sm:$0xf]
    %v1963 = vld [vmem:[#allocation13 + $0x88] sm:$0xf]
    %v1964 = vld [vmem:[#allocation13 + $0x8c] sm:$0xf]
    %v1965 = vld [vmem:[#allocation13 + $0x90] sm:$0xf]
    %v1966 = vld [vmem:[#allocation13 + $0x94] sm:$0xf]
    %v1967 = vld [vmem:[#allocation13 + $0x98] sm:$0xf]
    %v1968 = vld [vmem:[#allocation13 + $0x9c] sm:$0xf]
    %v1969 = vld [vmem:[#allocation13 + $0xa0] sm:$0xf]
    %v1970 = vld [vmem:[#allocation13 + $0xa4] sm:$0xf]
    %v1971 = vld [vmem:[#allocation13 + $0xa8] sm:$0xf]
    %v1972 = vld [vmem:[#allocation13 + $0xac] sm:$0xf]
    %v1973 = vld [vmem:[#allocation13 + $0xb0] sm:$0xf]
    %v1974 = vld [vmem:[#allocation13 + $0xb4] sm:$0xf]
    %v1975 = vld [vmem:[#allocation13 + $0xb8] sm:$0xf]
    %v1976 = vld [vmem:[#allocation13 + $0xbc] sm:$0xf]
    %v1977 = vld [vmem:[#allocation13 + $0xc0] sm:$0xf]
    %v1978 = vld [vmem:[#allocation13 + $0xc4] sm:$0xf]
    %v1979 = vld [vmem:[#allocation13 + $0xc8] sm:$0xf]
    %v1980 = vld [vmem:[#allocation13 + $0xcc] sm:$0xf]
    %v1981 = vld [vmem:[#allocation13 + $0xd0] sm:$0xf]
    %v1982 = vld [vmem:[#allocation13 + $0xd4] sm:$0xf]
    %v1983 = vld [vmem:[#allocation13 + $0xd8] sm:$0xf]
    %v1984 = vld [vmem:[#allocation13 + $0xdc] sm:$0xf]
    %v1985 = vld [vmem:[#allocation13 + $0xe0] sm:$0xf]
    %v1986 = vld [vmem:[#allocation13 + $0xe4] sm:$0xf]
    %v1987 = vld [vmem:[#allocation13 + $0xe8] sm:$0xf]
    %v1988 = vld [vmem:[#allocation13 + $0xec] sm:$0xf]
    %v1989 = vld [vmem:[#allocation13 + $0xf0] sm:$0xf]
    %v1990 = vld [vmem:[#allocation13 + $0xf4] sm:$0xf]
    %v1991 = vld [vmem:[#allocation13 + $0xf8] sm:$0xf]
    %v1992 = vld [vmem:[#allocation13 + $0xfc] sm:$0xf]
    %v1993 = vld [vmem:[%s12] sm:$0x1]
    %v1995 = vlaneseq
    %v1996 = vshrl.u32 %v1995, 7
    %v1997 = vsub.s32 0, %v1996
    %v1998 = vrot.slane %v1993, %v1997
    %v2064 = vunpack.c.l.b16 %v1929
    %v2065 = vunpack.c.l.b16 %v1930
    %v2066 = vunpack.c.l.b16 %v1931
    %v2067 = vunpack.c.l.b16 %v1932
    %v2068 = vunpack.c.l.b16 %v1933
    %v2069 = vunpack.c.l.b16 %v1934
    %v2070 = vunpack.c.l.b16 %v1935
    %v2071 = vunpack.c.l.b16 %v1936
    %v2072 = vunpack.c.l.b16 %v1937
    %v2073 = vunpack.c.l.b16 %v1938
    %v2074 = vunpack.c.l.b16 %v1939
    %v2075 = vunpack.c.l.b16 %v1940
    %v2076 = vunpack.c.l.b16 %v1941
    %v2077 = vunpack.c.l.b16 %v1942
    %v2078 = vunpack.c.l.b16 %v1943
    %v2079 = vunpack.c.l.b16 %v1944
    %v2080 = vunpack.c.l.b16 %v1945
    %v2081 = vunpack.c.l.b16 %v1946
    %v2082 = vunpack.c.l.b16 %v1947
    %v2083 = vunpack.c.l.b16 %v1948
    %v2084 = vunpack.c.l.b16 %v1949
    %v2085 = vunpack.c.l.b16 %v1950
    %v2086 = vunpack.c.l.b16 %v1951
    %v2087 = vunpack.c.l.b16 %v1952
    %v2088 = vunpack.c.l.b16 %v1953
    %v2089 = vunpack.c.l.b16 %v1954
    %v2090 = vunpack.c.l.b16 %v1955
    %v2091 = vunpack.c.l.b16 %v1956
    %v2092 = vunpack.c.l.b16 %v1957
    %v2093 = vunpack.c.l.b16 %v1958
    %v2094 = vunpack.c.l.b16 %v1959
    %v2095 = vunpack.c.l.b16 %v1960
    %v2096 = vunpack.c.l.b16 %v1961
    %v2097 = vunpack.c.l.b16 %v1962
    %v2098 = vunpack.c.l.b16 %v1963
    %v2099 = vunpack.c.l.b16 %v1964
    %v2100 = vunpack.c.l.b16 %v1965
    %v2101 = vunpack.c.l.b16 %v1966
    %v2102 = vunpack.c.l.b16 %v1967
    %v2103 = vunpack.c.l.b16 %v1968
    %v2104 = vunpack.c.l.b16 %v1969
    %v2105 = vunpack.c.l.b16 %v1970
    %v2106 = vunpack.c.l.b16 %v1971
    %v2107 = vunpack.c.l.b16 %v1972
    %v2108 = vunpack.c.l.b16 %v1973
    %v2109 = vunpack.c.l.b16 %v1974
    %v2110 = vunpack.c.l.b16 %v1975
    %v2111 = vunpack.c.l.b16 %v1976
    %v2112 = vunpack.c.l.b16 %v1977
    %v2113 = vunpack.c.l.b16 %v1978
    %v2114 = vunpack.c.l.b16 %v1979
    %v2115 = vunpack.c.l.b16 %v1980
    %v2116 = vunpack.c.l.b16 %v1981
    %v2117 = vunpack.c.l.b16 %v1982
    %v2118 = vunpack.c.l.b16 %v1983
    %v2119 = vunpack.c.l.b16 %v1984
    %v2120 = vunpack.c.l.b16 %v1985
    %v2121 = vunpack.c.l.b16 %v1986
    %v2122 = vunpack.c.l.b16 %v1987
    %v2123 = vunpack.c.l.b16 %v1988
    %v2124 = vunpack.c.l.b16 %v1989
    %v2125 = vunpack.c.l.b16 %v1990
    %v2126 = vunpack.c.l.b16 %v1991
    %v2127 = vunpack.c.l.b16 %v1992
    %v2128 = vpack.c.b16 %v2065, %v2064
    %v2129 = vpack.c.b16 %v2067, %v2066
    %v2130 = vpack.c.b16 %v2069, %v2068
    %v2131 = vpack.c.b16 %v2071, %v2070
    %v2132 = vpack.c.b16 %v2073, %v2072
    %v2133 = vpack.c.b16 %v2075, %v2074
    %v2134 = vpack.c.b16 %v2077, %v2076
    %v2135 = vpack.c.b16 %v2079, %v2078
    %v2136 = vpack.c.b16 %v2081, %v2080
    %v2137 = vpack.c.b16 %v2083, %v2082
    %v2138 = vpack.c.b16 %v2085, %v2084
    %v2139 = vpack.c.b16 %v2087, %v2086
    %v2140 = vpack.c.b16 %v2089, %v2088
    %v2141 = vpack.c.b16 %v2091, %v2090
    %v2142 = vpack.c.b16 %v2093, %v2092
    %v2143 = vpack.c.b16 %v2095, %v2094
    %v2144 = vpack.c.b16 %v2097, %v2096
    %v2145 = vpack.c.b16 %v2099, %v2098
    %v2146 = vpack.c.b16 %v2101, %v2100
    %v2147 = vpack.c.b16 %v2103, %v2102
    %v2148 = vpack.c.b16 %v2105, %v2104
    %v2149 = vpack.c.b16 %v2107, %v2106
    %v2150 = vpack.c.b16 %v2109, %v2108
    %v2151 = vpack.c.b16 %v2111, %v2110
    %v2152 = vpack.c.b16 %v2113, %v2112
    %v2153 = vpack.c.b16 %v2115, %v2114
    %v2154 = vpack.c.b16 %v2117, %v2116
    %v2155 = vpack.c.b16 %v2119, %v2118
    %v2156 = vpack.c.b16 %v2121, %v2120
    %v2157 = vpack.c.b16 %v2123, %v2122
    %v2158 = vpack.c.b16 %v2125, %v2124
    %v2159 = vpack.c.b16 %v2127, %v2126
    %2192 = vmatprep.subr.bf16.mxu0 0
    %2193 = vmatpush1.bf16.msra.mxu0 %v2128
    %2194 = vmatprep.subr.bf16.mxu0 0
    %2195 = vmatpush1.bf16.msra.mxu0 %v2129
    %2196 = vmatprep.subr.bf16.mxu0 0
    %2197 = vmatpush1.bf16.msra.mxu0 %v2130
    %2198 = vmatprep.subr.bf16.mxu0 0
    %2199 = vmatpush1.bf16.msra.mxu0 %v2131
    %2200 = vmatprep.subr.bf16.mxu0 0
    %2201 = vmatpush1.bf16.msra.mxu0 %v2132
    %2202 = vmatprep.subr.bf16.mxu0 0
    %2203 = vmatpush1.bf16.msra.mxu0 %v2133
    %2204 = vmatprep.subr.bf16.mxu0 0
    %2205 = vmatpush1.bf16.msra.mxu0 %v2134
    %2206 = vmatprep.subr.bf16.mxu0 0
    %2207 = vmatpush1.bf16.msra.mxu0 %v2135
    %2208 = vmatprep.subr.bf16.mxu0 0
    %2209 = vmatpush1.bf16.msra.mxu0 %v2136
    %2210 = vmatprep.subr.bf16.mxu0 0
    %2211 = vmatpush1.bf16.msra.mxu0 %v2137
    %2212 = vmatprep.subr.bf16.mxu0 0
    %2213 = vmatpush1.bf16.msra.mxu0 %v2138
    %2214 = vmatprep.subr.bf16.mxu0 0
    %2215 = vmatpush1.bf16.msra.mxu0 %v2139
    %2216 = vmatprep.subr.bf16.mxu0 0
    %2217 = vmatpush1.bf16.msra.mxu0 %v2140
    %2218 = vmatprep.subr.bf16.mxu0 0
    %2219 = vmatpush1.bf16.msra.mxu0 %v2141
    %2220 = vmatprep.subr.bf16.mxu0 0
    %2221 = vmatpush1.bf16.msra.mxu0 %v2142
    %2222 = vmatprep.subr.bf16.mxu0 0
    %2223 = vmatpush1.bf16.msra.mxu0 %v2143
    %2224 = vmatprep.mubr.bf16.mxu0 %v1926
    %2225 = vmatmul.mubr.bf16.gmra.mrb[0].mxu0 %v1925
    %v2226 = vpop.f32.mrb[0].mxu0
    %v2227 = vadd.f32 %v1998, %v2226
    %v2228 = vpop.f32.mrb[0].mxu0
    %v2229 = vpop.f32.mrb[0].mxu0
    %v2230 = vadd.f32 %v1998, %v2229
    %v2231 = vpop.f32.mrb[0].mxu0
    %2232 = vdwg.mxu0
    %2233 = vmatprep.subr.bf16.mxu0 0
    %2234 = vmatpush1.bf16.msra.mxu0 %v2144
    %2235 = vmatprep.subr.bf16.mxu0 0
    %2236 = vmatpush1.bf16.msra.mxu0 %v2145
    %2237 = vmatprep.subr.bf16.mxu0 0
    %2238 = vmatpush1.bf16.msra.mxu0 %v2146
    %2239 = vmatprep.subr.bf16.mxu0 0
    %2240 = vmatpush1.bf16.msra.mxu0 %v2147
    %2241 = vmatprep.subr.bf16.mxu0 0
    %2242 = vmatpush1.bf16.msra.mxu0 %v2148
    %2243 = vmatprep.subr.bf16.mxu0 0
    %2244 = vmatpush1.bf16.msra.mxu0 %v2149
    %2245 = vmatprep.subr.bf16.mxu0 0
    %2246 = vmatpush1.bf16.msra.mxu0 %v2150
    %2247 = vmatprep.subr.bf16.mxu0 0
    %2248 = vmatpush1.bf16.msra.mxu0 %v2151
    %2249 = vmatprep.subr.bf16.mxu0 0
    %2250 = vmatpush1.bf16.msra.mxu0 %v2152
    %2251 = vmatprep.subr.bf16.mxu0 0
    %2252 = vmatpush1.bf16.msra.mxu0 %v2153
    %2253 = vmatprep.subr.bf16.mxu0 0
    %2254 = vmatpush1.bf16.msra.mxu0 %v2154
    %2255 = vmatprep.subr.bf16.mxu0 0
    %2256 = vmatpush1.bf16.msra.mxu0 %v2155
    %2257 = vmatprep.subr.bf16.mxu0 0
    %2258 = vmatpush1.bf16.msra.mxu0 %v2156
    %2259 = vmatprep.subr.bf16.mxu0 0
    %2260 = vmatpush1.bf16.msra.mxu0 %v2157
    %2261 = vmatprep.subr.bf16.mxu0 0
    %2262 = vmatpush1.bf16.msra.mxu0 %v2158
    %2263 = vmatprep.subr.bf16.mxu0 0
    %2264 = vmatpush1.bf16.msra.mxu0 %v2159
    %2265 = vmatprep.mubr.bf16.mxu0 %v1928
    %2266 = vmatmul.mubr.bf16.gmra.mrb[0].mxu0 %v1927
    %v2267 = vpop.f32.mrb[0].mxu0
    %v2268 = vadd.f32 %v2227, %v2267
    %v2269 = vpop.f32.mrb[0].mxu0
    %v2270 = vpop.f32.mrb[0].mxu0
    %v2271 = vadd.f32 %v2230, %v2270
    %v2272 = vpop.f32.mrb[0].mxu0
    %2273 = vdwg.mxu0
    %v2274 = vadd.f32 %v1518, %v2268
    %v2275 = vadd.f32 %v1519, %v2271
    %2276 = vst [vmem:[#allocation14] sm:$0xff] %v2274
    %2277 = vst [vmem:[#allocation14 + $0x8] sm:$0xff] %v2275
    // Predicated region
    $region82: #{tpu_custom_call.1} parent=1 // pred_check
      _
    $region83: #{tpu_custom_call.1} parent=1 // pred_check_branch
      %2279 = sbr.rel (0) target = $region85
    $region84: #{tpu_custom_call.1} parent=1 // pred_region
      %s2281 = ssub.s32 256, 256
      %2282 = vsyncadd [#allocation4], %s2281
      %s2283 = sshll.u32 [#allocation14], 4
      %s2284 = int_to_ptr.vmem [resolvable:$true] %s2283
      %2289 = dma.vmem_to_hbm [thread:$0]  %s2284, 256, %s13, [#allocation4], 128, 128, 8
    $region85: #{tpu_custom_call.1} parent=1 // pred_fallthru
      _
    // Predicated region
    $region86: #{tpu_custom_call.1} parent=1 // pred_check
      _
    $region87: #{tpu_custom_call.1} parent=1 // pred_check_branch
      %2291 = sbr.rel (0) target = $region89
    $region88: #{tpu_custom_call.1} parent=1 // pred_region
      %2292 = dma.done [#allocation4], 256
    $region89: #{tpu_custom_call.1} parent=1 // pred_fallthru
      _
    %2293 = vsyncpa [#allocation3], 1
    %2294 = vsyncpa [#allocation6], 1
    %2295 = vsyncpa [#allocation9], 1
    %2296 = vsyncpa [#allocation12], 1
    %2297 = vsyncpa [#allocation4], 1

</llo_original>
